<compile_context>
chip_gen: v5e
topology: v5e:2x2
jax: 0.10.0
libtpu: 0.0.40
codegen_flags: <defaults>
</compile_context>

<pallas_src>
import functools

import numpy as np
import jax
import jax.numpy as jnp
from jax.experimental import pallas as pl
from jax.experimental.pallas import tpu as pltpu

PAD_INDEX = 0  # config.pad_index in the original code
_VMEM_LIMIT = 48 * 1024 * 1024  # safe scoped-VMEM limit on v5e/v6e/v7x


def _round_up(x, m):
    return ((x + m - 1) // m) * m


def _nbytes(a):
    return int(a.size) * int(jnp.dtype(a.dtype).itemsize)


def get_sinusoid_encoding_table(n_position, d_hid, padding_idx=None):
    """Sinusoid position encoding table (same math as the PyTorch helper)."""
    exponents = np.array([2 * (i // 2) / d_hid for i in range(d_hid)])
    pow_table = np.power(10000.0, exponents)
    table = np.array([pos / pow_table for pos in range(n_position)])
    table[:, 0::2] = np.sin(table[:, 0::2])
    table[:, 1::2] = np.cos(table[:, 1::2])
    if padding_idx is not None:
        table[padding_idx] = 0.0
    return jnp.asarray(table, dtype=jnp.float32)


# ----------------------------------------------------------------------------
# Multi-head attention block kernel (W_Q/K/V -> per-head scaled-dot attention
# -> W_O -> residual -> LayerNorm), one batch element per grid step.
# ----------------------------------------------------------------------------
def mha_kernel(x_ref, mask_ref, wq_ref, bq_ref, wk_ref, bk_ref, wv_ref, bv_ref,
               wo_ref, bo_ref, gamma_ref, beta_ref, o_ref, attn_ref,
               *, n_head, d_k, d_v):
    x = x_ref[0].astype(jnp.float32)            # [S, D]
    pad = mask_ref[0]                           # [S, S] (1.0 where key is PAD)

    # hoisted small operands (read once per grid step)
    bq = bq_ref[...].astype(jnp.float32)
    bk = bk_ref[...].astype(jnp.float32)
    bv = bv_ref[...].astype(jnp.float32)
    bo = bo_ref[...].astype(jnp.float32)
    gamma = gamma_ref[...].astype(jnp.float32)
    beta = beta_ref[...].astype(jnp.float32)

    # QKV projections: bf16 MXU operands, f32 accumulation.
    xc = x.astype(wq_ref.dtype)
    q = jnp.dot(xc, wq_ref[...], preferred_element_type=jnp.float32) + bq
    k = jnp.dot(xc, wk_ref[...], preferred_element_type=jnp.float32) + bk
    v = jnp.dot(xc, wv_ref[...], preferred_element_type=jnp.float32) + bv

    scale = 1.0 / (d_k ** 0.5)
    ctx_parts = []
    for h in range(n_head):                     # static unrolled head loop
        q_h = q[:, h * d_k:(h + 1) * d_k]
        k_h = k[:, h * d_k:(h + 1) * d_k]
        v_h = v[:, h * d_v:(h + 1) * d_v]
        scores = jax.lax.dot_general(
            q_h.astype(jnp.bfloat16), k_h.astype(jnp.bfloat16),
            (((1,), (1,)), ((), ())),
            preferred_element_type=jnp.float32) * scale        # [S, S]
        scores = jnp.where(pad > 0.5, jnp.float32(-1e9), scores)  # masked_fill
        m = jnp.max(scores, axis=-1, keepdims=True)
        e = jnp.exp(scores - m)
        w = e / jnp.sum(e, axis=-1, keepdims=True)             # softmax
        attn_ref[0, h] = w.astype(attn_ref.dtype)
        ctx_parts.append(jnp.dot(w.astype(jnp.bfloat16),
                                 v_h.astype(jnp.bfloat16),
                                 preferred_element_type=jnp.float32))
    ctx = jnp.concatenate(ctx_parts, axis=-1)                  # [S, H*d_v]

    out = jnp.dot(ctx.astype(wo_ref.dtype), wo_ref[...],
                  preferred_element_type=jnp.float32) + bo
    y = out + x                                                # dropout == id
    mean = jnp.mean(y, axis=-1, keepdims=True)
    cent = y - mean
    var = jnp.mean(cent * cent, axis=-1, keepdims=True)
    y_norm = cent * jax.lax.rsqrt(var + 1e-5)
    o_ref[0] = (y_norm * gamma + beta).astype(o_ref.dtype)


def mha_block(x, maskf, params, *, n_head, d_k, d_v):
    """x: [B, S, d_model] f32, maskf: [B, S, S] f32 (1.0 where key is PAD)."""
    B, S, D = x.shape
    wq, bq, wk, bk, wv, bv, wo, bo, gamma, beta = params
    hk, hv = n_head * d_k, n_head * d_v

    flops = int(B * (2 * S * D * hk * 2 + 2 * S * D * hv
                     + 2 * n_head * S * S * d_k + 2 * n_head * S * S * d_v
                     + 2 * S * hv * D))
    bytes_accessed = int(2 * _nbytes(x) + _nbytes(maskf)
                         + sum(_nbytes(a) for a in params)
                         + B * n_head * S * S * 4)

    kernel = functools.partial(mha_kernel, n_head=n_head, d_k=d_k, d_v=d_v)
    out, attn = pl.pallas_call(
        kernel,
        grid=(B,),
        out_shape=(jax.ShapeDtypeStruct((B, S, D), x.dtype),
                   jax.ShapeDtypeStruct((B, n_head, S, S), jnp.float32)),
        in_specs=[
            pl.BlockSpec((1, S, D), lambda b: (b, 0, 0)),       # x (per batch)
            pl.BlockSpec((1, S, S), lambda b: (b, 0, 0)),       # pad mask
            pl.BlockSpec((D, hk), lambda b: (0, 0)),            # W_Q (resident)
            pl.BlockSpec((1, hk), lambda b: (0, 0)),
            pl.BlockSpec((D, hk), lambda b: (0, 0)),            # W_K
            pl.BlockSpec((1, hk), lambda b: (0, 0)),
            pl.BlockSpec((D, hv), lambda b: (0, 0)),            # W_V
            pl.BlockSpec((1, hv), lambda b: (0, 0)),
            pl.BlockSpec((hv, D), lambda b: (0, 0)),            # W_O
            pl.BlockSpec((1, D), lambda b: (0, 0)),
            pl.BlockSpec((1, D), lambda b: (0, 0)),             # LN gamma
            pl.BlockSpec((1, D), lambda b: (0, 0)),             # LN beta
        ],
        out_specs=(
            pl.BlockSpec((1, S, D), lambda b: (b, 0, 0)),
            pl.BlockSpec((1, n_head, S, S), lambda b: (b, 0, 0, 0)),
        ),
        compiler_params=pltpu.CompilerParams(
            dimension_semantics=("parallel",),
            vmem_limit_bytes=_VMEM_LIMIT),
        cost_estimate=pl.CostEstimate(
            flops=flops, transcendentals=int(B * n_head * S * S),
            bytes_accessed=bytes_accessed),
    )(x, maskf, wq, bq, wk, bk, wv, bv, wo, bo, gamma, beta)
    return out, attn


# ----------------------------------------------------------------------------
# Position-wise FFN kernel (conv1(k=1) -> ReLU -> conv2(k=1) -> residual -> LN),
# token-tiled over a 1-D grid with resident weights.
# ----------------------------------------------------------------------------
def ffn_kernel(x_ref, w1_ref, b1_ref, w2_ref, b2_ref, gamma_ref, beta_ref, o_ref):
    x = x_ref[...].astype(jnp.float32)                   # [TM, D]
    b1 = b1_ref[...].astype(jnp.float32)
    b2 = b2_ref[...].astype(jnp.float32)
    gamma = gamma_ref[...].astype(jnp.float32)
    beta = beta_ref[...].astype(jnp.float32)

    # conv1 (k=1) == x @ W1 + b1, bf16 MXU operands / f32 accumulation.
    h = jnp.dot(x.astype(w1_ref.dtype), w1_ref[...],
                preferred_element_type=jnp.float32) + b1
    h = jnp.maximum(h, 0.0)                              # ReLU
    # conv2 (k=1) == h @ W2 + b2
    y = jnp.dot(h.astype(w2_ref.dtype), w2_ref[...],
                preferred_element_type=jnp.float32) + b2
    y = y + x                                            # dropout == identity
    mean = jnp.mean(y, axis=-1, keepdims=True)
    cent = y - mean
    var = jnp.mean(cent * cent, axis=-1, keepdims=True)
    y_norm = cent * jax.lax.rsqrt(var + 1e-5)
    o_ref[...] = (y_norm * gamma + beta).astype(o_ref.dtype)


def ffn_block(x, params, *, tm_max=256):
    """x: [B, S, d_model].  tm_max sized for v7x/v5e; can be 512-1024 on v6e."""
    w1, b1, w2, b2, gamma, beta = params
    B, S, D = x.shape
    d_inner = w1.shape[1]
    M = B * S
    x2d = x.reshape(M, D)

    TM = min(tm_max, _round_up(M, 8))
    M_pad = _round_up(M, TM)
    if M_pad != M:
        x2d = jnp.pad(x2d, ((0, M_pad - M), (0, 0)))

    flops = int(2 * M_pad * D * d_inner * 2 + 10 * M_pad * D)
    bytes_accessed = int(2 * M_pad * D * 4 + sum(_nbytes(a) for a in params))

    out2d = pl.pallas_call(
        ffn_kernel,
        grid=(M_pad // TM,),
        out_shape=jax.ShapeDtypeStruct((M_pad, D), x.dtype),
        in_specs=[
            pl.BlockSpec((TM, D), lambda i: (i, 0)),         # activation tile
            pl.BlockSpec((D, d_inner), lambda i: (0, 0)),    # W1 (resident)
            pl.BlockSpec((1, d_inner), lambda i: (0, 0)),
            pl.BlockSpec((d_inner, D), lambda i: (0, 0)),    # W2 (resident)
            pl.BlockSpec((1, D), lambda i: (0, 0)),
            pl.BlockSpec((1, D), lambda i: (0, 0)),          # LN gamma
            pl.BlockSpec((1, D), lambda i: (0, 0)),          # LN beta
        ],
        out_specs=pl.BlockSpec((TM, D), lambda i: (i, 0)),
        compiler_params=pltpu.CompilerParams(
            dimension_semantics=("parallel",),
            vmem_limit_bytes=_VMEM_LIMIT),
        cost_estimate=pl.CostEstimate(
            flops=flops, transcendentals=int(M_pad),
            bytes_accessed=bytes_accessed),
    )(x2d, w1, b1, w2, b2, gamma, beta)
    return out2d[:M].reshape(B, S, D)


# ----------------------------------------------------------------------------
# Full Encoder forward.
# ----------------------------------------------------------------------------
def encoder_forward(src_seq, params, *, n_head, d_k, d_v, pad_index=PAD_INDEX):
    B, S = src_seq.shape
    key_is_pad = (src_seq == pad_index).astype(jnp.float32)            # [B, S]
    maskf = jnp.broadcast_to(key_is_pad[:, None, :], (B, S, S))
    maskf = maskf.astype(jnp.float32)

    # Embedding (token gather + sinusoid PE) stays in plain JAX.
    x = params["word_emb"][src_seq] + params["pos_table"][:S][None, :, :]
    x = x.astype(jnp.float32)

    enc_output_list, attn_weight_list = [], []
    for layer in params["layers"]:
        x, attn = mha_block(x, maskf, layer["mha"],
                            n_head=n_head, d_k=d_k, d_v=d_v)
        x = ffn_block(x, layer["ffn"])
        enc_output_list.append(x)
        attn_weight_list.append(attn)      # [B, n_head, S, S] per layer
    return enc_output_list, attn_weight_list


# ----------------------------------------------------------------------------
# Parameter init (mimics the PyTorch defaults) and pure-JAX reference.
# ----------------------------------------------------------------------------
def init_encoder_params(key, *, n_vocab, max_seq_len, n_layer, n_head, d_k, d_v,
                        d_model, d_inner, param_dtype=jnp.bfloat16):
    def uni(k, shape, fan_in):
        b = 1.0 / float(np.sqrt(fan_in))
        return jax.random.uniform(k, shape, jnp.float32, -b, b)

    keys = jax.random.split(key, 1 + n_layer)
    word_emb = jax.random.normal(keys[0], (n_vocab, d_model), jnp.float32)
    pos_table = get_sinusoid_encoding_table(max_seq_len, d_model)

    layers = []
    for li in range(n_layer):
        lk = jax.random.split(keys[1 + li], 12)
        hk, hv = n_head * d_k, n_head * d_v
        # Linear / Conv1d weights are stored pre-transposed ([in, out]) and in
        # bf16 so the kernels run bf16 MXU matmuls with f32 accumulation.
        wq = uni(lk[0], (d_model, hk), d_model).astype(param_dtype)
        bq = uni(lk[1], (1, hk), d_model)
        wk = uni(lk[2], (d_model, hk), d_model).astype(param_dtype)
        bk = uni(lk[3], (1, hk), d_model)
        wv = uni(lk[4], (d_model, hv), d_model).astype(param_dtype)
        bv = uni(lk[5], (1, hv), d_model)
        wo = uni(lk[6], (hv, d_model), hv).astype(param_dtype)
        bo = uni(lk[7], (1, d_model), hv)
        g1 = jnp.ones((1, d_model), jnp.float32)
        be1 = jnp.zeros((1, d_model), jnp.float32)
        w1 = uni(lk[8], (d_model, d_inner), d_model).astype(param_dtype)
        b1 = uni(lk[9], (1, d_inner), d_model)
        w2 = uni(lk[10], (d_inner, d_model), d_inner).astype(param_dtype)
        b2 = uni(lk[11], (1, d_model), d_inner)
        g2 = jnp.ones((1, d_model), jnp.float32)
        be2 = jnp.zeros((1, d_model), jnp.float32)
        layers.append({"mha": (wq, bq, wk, bk, wv, bv, wo, bo, g1, be1),
                       "ffn": (w1, b1, w2, b2, g2, be2)})
    return {"word_emb": word_emb, "pos_table": pos_table, "layers": layers}


def _ref_mha(x, maskf, p, *, n_head, d_k, d_v):
    wq, bq, wk, bk, wv, bv, wo, bo, gamma, beta = p
    B, S, D = x.shape
    xc = x.astype(wq.dtype)
    q = jnp.einsum("bsd,dk->bsk", xc, wq, preferred_element_type=jnp.float32) + bq[0]
    k = jnp.einsum("bsd,dk->bsk", xc, wk, preferred_element_type=jnp.float32) + bk[0]
    v = jnp.einsum("bsd,dk->bsk", xc, wv, preferred_element_type=jnp.float32) + bv[0]
    q = q.reshape(B, S, n_head, d_k)
    k = k.reshape(B, S, n_head, d_k)
    v = v.reshape(B, S, n_head, d_v)
    scale = 1.0 / (d_k ** 0.5)
    scores = jnp.einsum("bqhe,bkhe->bhqk", q.astype(jnp.bfloat16),
                        k.astype(jnp.bfloat16),
                        preferred_element_type=jnp.float32) * scale
    scores = jnp.where(maskf[:, None] > 0.5, jnp.float32(-1e9), scores)
    m = jnp.max(scores, axis=-1, keepdims=True)
    e = jnp.exp(scores - m)
    w = e / jnp.sum(e, axis=-1, keepdims=True)
    ctx = jnp.einsum("bhqk,bkhe->bqhe", w.astype(jnp.bfloat16),
                     v.astype(jnp.bfloat16),
                     preferred_element_type=jnp.float32)
    ctx = ctx.reshape(B, S, n_head * d_v)
    out = jnp.einsum("bse,ed->bsd", ctx.astype(wo.dtype), wo,
                     preferred_element_type=jnp.float32) + bo[0]
    y = out + x
    mean = jnp.mean(y, axis=-1, keepdims=True)
    var = jnp.mean((y - mean) ** 2, axis=-1, keepdims=True)
    return ((y - mean) * jax.lax.rsqrt(var + 1e-5)) * gamma[0] + beta[0], w


def _ref_ffn(x, p):
    w1, b1, w2, b2, gamma, beta = p
    h = jnp.einsum("bsd,di->bsi", x.astype(w1.dtype), w1,
                   preferred_element_type=jnp.float32) + b1[0]
    h = jnp.maximum(h, 0.0)
    y = jnp.einsum("bsi,id->bsd", h.astype(w2.dtype), w2,
                   preferred_element_type=jnp.float32) + b2[0]
    y = y + x
    mean = jnp.mean(y, axis=-1, keepdims=True)
    var = jnp.mean((y - mean) ** 2, axis=-1, keepdims=True)
    return ((y - mean) * jax.lax.rsqrt(var + 1e-5)) * gamma[0] + beta[0]


def reference_encoder(src_seq, params, *, n_head, d_k, d_v, pad_index=PAD_INDEX):
    B, S = src_seq.shape
    key_is_pad = (src_seq == pad_index).astype(jnp.float32)
    maskf = jnp.broadcast_to(key_is_pad[:, None, :], (B, S, S)).astype(jnp.float32)
    x = params["word_emb"][src_seq] + params["pos_table"][:S][None, :, :]
    x = x.astype(jnp.float32)
    outs, attns = [], []
    for layer in params["layers"]:
        x, w = _ref_mha(x, maskf, layer["mha"], n_head=n_head, d_k=d_k, d_v=d_v)
        x = _ref_ffn(x, layer["ffn"])
        outs.append(x)
        attns.append(w)
    return outs, attns


if __name__ == "__main__":
    # Small but lane-aligned shapes (d_model, d_inner, n_head*d_k multiples of 128).
    n_vocab, max_seq_len = 64, 16
    n_layer, n_head, d_k, d_v = 2, 4, 32, 32
    d_model, d_inner = 128, 256
    B, S = 2, 8

    key = jax.random.PRNGKey(0)
    kp, ks = jax.random.split(key)
    params = init_encoder_params(
        kp, n_vocab=n_vocab, max_seq_len=max_seq_len, n_layer=n_layer,
        n_head=n_head, d_k=d_k, d_v=d_v, d_model=d_model, d_inner=d_inner)

    src_seq = jax.random.randint(ks, (B, S), 1, n_vocab, dtype=jnp.int32)
    src_seq = src_seq.at[:, -2:].set(PAD_INDEX)   # exercise the padding mask

    enc_outs, attn_ws = encoder_forward(src_seq, params,
                                        n_head=n_head, d_k=d_k, d_v=d_v)
    jax.block_until_ready((enc_outs, attn_ws))

    ref_outs, ref_ws = reference_encoder(src_seq, params,
                                         n_head=n_head, d_k=d_k, d_v=d_v)

    assert len(enc_outs) == n_layer and len(attn_ws) == n_layer
    for o, r in zip(enc_outs, ref_outs):
        assert o.shape == (B, S, d_model)
        assert jnp.allclose(o, r, atol=2e-2, rtol=2e-2), "encoder output mismatch"
    for a, r in zip(attn_ws, ref_ws):
        assert a.shape == (B, n_head, S, S)
        assert jnp.allclose(a, r, atol=2e-2, rtol=2e-2), "attention weight mismatch"

    print("KERNEL_OK")
</pallas_src>

<mosaic_0001>
module attributes {stable_mosaic.version = 11 : i64} {
  func.func @mha_kernel(%arg0: i32, %arg1: memref<1x8x128xf32, #tpu.memory_space<vmem>>, %arg2: memref<1x8x8xf32, #tpu.memory_space<vmem>>, %arg3: memref<128x128xbf16, #tpu.memory_space<vmem>>, %arg4: memref<1x128xf32, #tpu.memory_space<vmem>>, %arg5: memref<128x128xbf16, #tpu.memory_space<vmem>>, %arg6: memref<1x128xf32, #tpu.memory_space<vmem>>, %arg7: memref<128x128xbf16, #tpu.memory_space<vmem>>, %arg8: memref<1x128xf32, #tpu.memory_space<vmem>>, %arg9: memref<128x128xbf16, #tpu.memory_space<vmem>>, %arg10: memref<1x128xf32, #tpu.memory_space<vmem>>, %arg11: memref<1x128xf32, #tpu.memory_space<vmem>>, %arg12: memref<1x128xf32, #tpu.memory_space<vmem>>, %arg13: memref<1x8x128xf32, #tpu.memory_space<vmem>>, %arg14: memref<1x4x8x8xf32, #tpu.memory_space<vmem>>) attributes {dimension_semantics = [#tpu.dimension_semantics<parallel>], iteration_bounds = array<i64: 2>, scalar_prefetch = 0 : i64, scratch_operands = 0 : i64, tpu.core_type = #tpu.core_type<tc>, window_params = [{transform_indices = @transform_0, window_bounds = array<i64: 1, 8, 128>}, {transform_indices = @transform_1, window_bounds = array<i64: 1, 8, 8>}, {pipeline_mode = #tpu.pipeline_mode<synchronous>, transform_indices = @transform_2, window_bounds = array<i64: 128, 128>}, {pipeline_mode = #tpu.pipeline_mode<synchronous>, transform_indices = @transform_3, window_bounds = array<i64: 1, 128>}, {pipeline_mode = #tpu.pipeline_mode<synchronous>, transform_indices = @transform_4, window_bounds = array<i64: 128, 128>}, {pipeline_mode = #tpu.pipeline_mode<synchronous>, transform_indices = @transform_5, window_bounds = array<i64: 1, 128>}, {pipeline_mode = #tpu.pipeline_mode<synchronous>, transform_indices = @transform_6, window_bounds = array<i64: 128, 128>}, {pipeline_mode = #tpu.pipeline_mode<synchronous>, transform_indices = @transform_7, window_bounds = array<i64: 1, 128>}, {pipeline_mode = #tpu.pipeline_mode<synchronous>, transform_indices = @transform_8, window_bounds = array<i64: 128, 128>}, {pipeline_mode = #tpu.pipeline_mode<synchronous>, transform_indices = @transform_9, window_bounds = array<i64: 1, 128>}, {pipeline_mode = #tpu.pipeline_mode<synchronous>, transform_indices = @transform_10, window_bounds = array<i64: 1, 128>}, {pipeline_mode = #tpu.pipeline_mode<synchronous>, transform_indices = @transform_11, window_bounds = array<i64: 1, 128>}, {transform_indices = @transform_12, window_bounds = array<i64: 1, 8, 128>}, {transform_indices = @transform_13, window_bounds = array<i64: 1, 4, 8, 8>}]} {
    %c0 = arith.constant 0 : index
    %c0_0 = arith.constant 0 : index
    %c0_1 = arith.constant 0 : index
    %0 = vector.load %arg1[%c0, %c0_0, %c0_1] : memref<1x8x128xf32, #tpu.memory_space<vmem>>, vector<1x8x128xf32>
    %1 = vector.shape_cast %0 : vector<1x8x128xf32> to vector<8x128xf32>
    %c0_2 = arith.constant 0 : index
    %c0_3 = arith.constant 0 : index
    %c0_4 = arith.constant 0 : index
    %2 = vector.load %arg2[%c0_2, %c0_3, %c0_4] : memref<1x8x8xf32, #tpu.memory_space<vmem>>, vector<1x8x8xf32>
    %3 = vector.shape_cast %2 : vector<1x8x8xf32> to vector<8x8xf32>
    %c0_5 = arith.constant 0 : index
    %c0_6 = arith.constant 0 : index
    %4 = vector.load %arg4[%c0_5, %c0_6] : memref<1x128xf32, #tpu.memory_space<vmem>>, vector<1x128xf32>
    %c0_7 = arith.constant 0 : index
    %c0_8 = arith.constant 0 : index
    %5 = vector.load %arg6[%c0_7, %c0_8] : memref<1x128xf32, #tpu.memory_space<vmem>>, vector<1x128xf32>
    %c0_9 = arith.constant 0 : index
    %c0_10 = arith.constant 0 : index
    %6 = vector.load %arg8[%c0_9, %c0_10] : memref<1x128xf32, #tpu.memory_space<vmem>>, vector<1x128xf32>
    %c0_11 = arith.constant 0 : index
    %c0_12 = arith.constant 0 : index
    %7 = vector.load %arg10[%c0_11, %c0_12] : memref<1x128xf32, #tpu.memory_space<vmem>>, vector<1x128xf32>
    %c0_13 = arith.constant 0 : index
    %c0_14 = arith.constant 0 : index
    %8 = vector.load %arg11[%c0_13, %c0_14] : memref<1x128xf32, #tpu.memory_space<vmem>>, vector<1x128xf32>
    %c0_15 = arith.constant 0 : index
    %c0_16 = arith.constant 0 : index
    %9 = vector.load %arg12[%c0_15, %c0_16] : memref<1x128xf32, #tpu.memory_space<vmem>>, vector<1x128xf32>
    %10 = arith.truncf %1 : vector<8x128xf32> to vector<8x128xbf16>
    %c0_17 = arith.constant 0 : index
    %c0_18 = arith.constant 0 : index
    %11 = vector.load %arg3[%c0_17, %c0_18] : memref<128x128xbf16, #tpu.memory_space<vmem>>, vector<128x128xbf16>
    %cst = arith.constant dense<0.000000e+00> : vector<8x128xf32>
    %12 = tpu.matmul %10, %11, %cst {dimension_numbers = #tpu.dot_dimension_numbers<[1], [0], [0], [1], [0, 0, 1, 1], [], []>} : vector<8x128xbf16>, vector<128x128xbf16>, vector<8x128xf32> -> vector<8x128xf32>
    %13 = vector.broadcast %4 : vector<1x128xf32> to vector<8x128xf32>
    %14 = arith.addf %12, %13 : vector<8x128xf32>
    %c0_19 = arith.constant 0 : index
    %c0_20 = arith.constant 0 : index
    %15 = vector.load %arg5[%c0_19, %c0_20] : memref<128x128xbf16, #tpu.memory_space<vmem>>, vector<128x128xbf16>
    %cst_21 = arith.constant dense<0.000000e+00> : vector<8x128xf32>
    %16 = tpu.matmul %10, %15, %cst_21 {dimension_numbers = #tpu.dot_dimension_numbers<[1], [0], [0], [1], [0, 0, 1, 1], [], []>} : vector<8x128xbf16>, vector<128x128xbf16>, vector<8x128xf32> -> vector<8x128xf32>
    %17 = vector.broadcast %5 : vector<1x128xf32> to vector<8x128xf32>
    %18 = arith.addf %16, %17 : vector<8x128xf32>
    %c0_22 = arith.constant 0 : index
    %c0_23 = arith.constant 0 : index
    %19 = vector.load %arg7[%c0_22, %c0_23] : memref<128x128xbf16, #tpu.memory_space<vmem>>, vector<128x128xbf16>
    %cst_24 = arith.constant dense<0.000000e+00> : vector<8x128xf32>
    %20 = tpu.matmul %10, %19, %cst_24 {dimension_numbers = #tpu.dot_dimension_numbers<[1], [0], [0], [1], [0, 0, 1, 1], [], []>} : vector<8x128xbf16>, vector<128x128xbf16>, vector<8x128xf32> -> vector<8x128xf32>
    %21 = vector.broadcast %6 : vector<1x128xf32> to vector<8x128xf32>
    %22 = arith.addf %20, %21 : vector<8x128xf32>
    %23 = vector.extract_strided_slice %14 {offsets = [0, 0], sizes = [8, 32], strides = [1, 1]} : vector<8x128xf32> to vector<8x32xf32>
    %24 = vector.extract_strided_slice %18 {offsets = [0, 0], sizes = [8, 32], strides = [1, 1]} : vector<8x128xf32> to vector<8x32xf32>
    %25 = vector.extract_strided_slice %22 {offsets = [0, 0], sizes = [8, 32], strides = [1, 1]} : vector<8x128xf32> to vector<8x32xf32>
    %26 = arith.truncf %23 : vector<8x32xf32> to vector<8x32xbf16>
    %27 = arith.truncf %24 : vector<8x32xf32> to vector<8x32xbf16>
    %cst_25 = arith.constant dense<0.000000e+00> : vector<8x8xf32>
    %28 = tpu.matmul %26, %27, %cst_25 {dimension_numbers = #tpu.dot_dimension_numbers<[1], [1], [0], [0], [0, 0, 1, 0], [], []>} : vector<8x32xbf16>, vector<8x32xbf16>, vector<8x8xf32> -> vector<8x8xf32>
    %cst_26 = arith.constant 0.176776692 : f32
    %29 = vector.broadcast %cst_26 : f32 to vector<8x8xf32>
    %30 = arith.mulf %28, %29 : vector<8x8xf32>
    %cst_27 = arith.constant 5.000000e-01 : f32
    %31 = vector.broadcast %cst_27 : f32 to vector<8x8xf32>
    %32 = arith.cmpf ogt, %3, %31 : vector<8x8xf32>
    %cst_28 = arith.constant -1.000000e+09 : f32
    %33 = vector.broadcast %cst_28 : f32 to vector<8x8xf32>
    %34 = arith.select %32, %33, %30 : vector<8x8xi1>, vector<8x8xf32>
    %cst_29 = arith.constant dense<0xFF800000> : vector<8xf32>
    %35 = vector.multi_reduction <maximumf>, %34, %cst_29 [1] : vector<8x8xf32> to vector<8xf32>
    %36 = vector.shape_cast %35 : vector<8xf32> to vector<8x1xf32>
    %37 = vector.broadcast %36 : vector<8x1xf32> to vector<8x8xf32>
    %38 = arith.subf %34, %37 : vector<8x8xf32>
    %39 = math.exp %38 : vector<8x8xf32>
    %cst_30 = arith.constant dense<0.000000e+00> : vector<8xf32>
    %40 = vector.multi_reduction <add>, %39, %cst_30 [1] : vector<8x8xf32> to vector<8xf32>
    %41 = vector.shape_cast %40 : vector<8xf32> to vector<8x1xf32>
    %42 = vector.broadcast %41 : vector<8x1xf32> to vector<8x8xf32>
    %43 = arith.divf %39, %42 : vector<8x8xf32>
    %c0_31 = arith.constant 0 : index
    %c0_32 = arith.constant 0 : index
    %c0_33 = arith.constant 0 : index
    %c0_34 = arith.constant 0 : index
    %44 = vector.load %arg14[%c0_31, %c0_32, %c0_33, %c0_34] : memref<1x4x8x8xf32, #tpu.memory_space<vmem>>, vector<1x1x8x8xf32>
    %45 = vector.shape_cast %44 : vector<1x1x8x8xf32> to vector<8x8xf32>
    %46 = vector.shape_cast %43 : vector<8x8xf32> to vector<1x1x8x8xf32>
    tpu.vector_store %arg14[%c0_31, %c0_32, %c0_33, %c0_34], %46 {strides = array<i32>} : memref<1x4x8x8xf32, #tpu.memory_space<vmem>>, vector<1x1x8x8xf32>,
    %47 = arith.truncf %43 : vector<8x8xf32> to vector<8x8xbf16>
    %48 = arith.truncf %25 : vector<8x32xf32> to vector<8x32xbf16>
    %cst_35 = arith.constant dense<0.000000e+00> : vector<8x32xf32>
    %49 = tpu.matmul %47, %48, %cst_35 {dimension_numbers = #tpu.dot_dimension_numbers<[1], [0], [0], [1], [0, 0, 1, 1], [], []>} : vector<8x8xbf16>, vector<8x32xbf16>, vector<8x32xf32> -> vector<8x32xf32>
    %50 = vector.extract_strided_slice %14 {offsets = [0, 32], sizes = [8, 32], strides = [1, 1]} : vector<8x128xf32> to vector<8x32xf32>
    %51 = vector.extract_strided_slice %18 {offsets = [0, 32], sizes = [8, 32], strides = [1, 1]} : vector<8x128xf32> to vector<8x32xf32>
    %52 = vector.extract_strided_slice %22 {offsets = [0, 32], sizes = [8, 32], strides = [1, 1]} : vector<8x128xf32> to vector<8x32xf32>
    %53 = arith.truncf %50 : vector<8x32xf32> to vector<8x32xbf16>
    %54 = arith.truncf %51 : vector<8x32xf32> to vector<8x32xbf16>
    %cst_36 = arith.constant dense<0.000000e+00> : vector<8x8xf32>
    %55 = tpu.matmul %53, %54, %cst_36 {dimension_numbers = #tpu.dot_dimension_numbers<[1], [1], [0], [0], [0, 0, 1, 0], [], []>} : vector<8x32xbf16>, vector<8x32xbf16>, vector<8x8xf32> -> vector<8x8xf32>
    %cst_37 = arith.constant 0.176776692 : f32
    %56 = vector.broadcast %cst_37 : f32 to vector<8x8xf32>
    %57 = arith.mulf %55, %56 : vector<8x8xf32>
    %cst_38 = arith.constant 5.000000e-01 : f32
    %58 = vector.broadcast %cst_38 : f32 to vector<8x8xf32>
    %59 = arith.cmpf ogt, %3, %58 : vector<8x8xf32>
    %cst_39 = arith.constant -1.000000e+09 : f32
    %60 = vector.broadcast %cst_39 : f32 to vector<8x8xf32>
    %61 = arith.select %59, %60, %57 : vector<8x8xi1>, vector<8x8xf32>
    %cst_40 = arith.constant dense<0xFF800000> : vector<8xf32>
    %62 = vector.multi_reduction <maximumf>, %61, %cst_40 [1] : vector<8x8xf32> to vector<8xf32>
    %63 = vector.shape_cast %62 : vector<8xf32> to vector<8x1xf32>
    %64 = vector.broadcast %63 : vector<8x1xf32> to vector<8x8xf32>
    %65 = arith.subf %61, %64 : vector<8x8xf32>
    %66 = math.exp %65 : vector<8x8xf32>
    %cst_41 = arith.constant dense<0.000000e+00> : vector<8xf32>
    %67 = vector.multi_reduction <add>, %66, %cst_41 [1] : vector<8x8xf32> to vector<8xf32>
    %68 = vector.shape_cast %67 : vector<8xf32> to vector<8x1xf32>
    %69 = vector.broadcast %68 : vector<8x1xf32> to vector<8x8xf32>
    %70 = arith.divf %66, %69 : vector<8x8xf32>
    %c0_42 = arith.constant 0 : index
    %c1 = arith.constant 1 : index
    %c0_43 = arith.constant 0 : index
    %c0_44 = arith.constant 0 : index
    %71 = vector.load %arg14[%c0_42, %c1, %c0_43, %c0_44] : memref<1x4x8x8xf32, #tpu.memory_space<vmem>>, vector<1x1x8x8xf32>
    %72 = vector.shape_cast %71 : vector<1x1x8x8xf32> to vector<8x8xf32>
    %73 = vector.shape_cast %70 : vector<8x8xf32> to vector<1x1x8x8xf32>
    tpu.vector_store %arg14[%c0_42, %c1, %c0_43, %c0_44], %73 {strides = array<i32>} : memref<1x4x8x8xf32, #tpu.memory_space<vmem>>, vector<1x1x8x8xf32>,
    %74 = arith.truncf %70 : vector<8x8xf32> to vector<8x8xbf16>
    %75 = arith.truncf %52 : vector<8x32xf32> to vector<8x32xbf16>
    %cst_45 = arith.constant dense<0.000000e+00> : vector<8x32xf32>
    %76 = tpu.matmul %74, %75, %cst_45 {dimension_numbers = #tpu.dot_dimension_numbers<[1], [0], [0], [1], [0, 0, 1, 1], [], []>} : vector<8x8xbf16>, vector<8x32xbf16>, vector<8x32xf32> -> vector<8x32xf32>
    %77 = vector.extract_strided_slice %14 {offsets = [0, 64], sizes = [8, 32], strides = [1, 1]} : vector<8x128xf32> to vector<8x32xf32>
    %78 = vector.extract_strided_slice %18 {offsets = [0, 64], sizes = [8, 32], strides = [1, 1]} : vector<8x128xf32> to vector<8x32xf32>
    %79 = vector.extract_strided_slice %22 {offsets = [0, 64], sizes = [8, 32], strides = [1, 1]} : vector<8x128xf32> to vector<8x32xf32>
    %80 = arith.truncf %77 : vector<8x32xf32> to vector<8x32xbf16>
    %81 = arith.truncf %78 : vector<8x32xf32> to vector<8x32xbf16>
    %cst_46 = arith.constant dense<0.000000e+00> : vector<8x8xf32>
    %82 = tpu.matmul %80, %81, %cst_46 {dimension_numbers = #tpu.dot_dimension_numbers<[1], [1], [0], [0], [0, 0, 1, 0], [], []>} : vector<8x32xbf16>, vector<8x32xbf16>, vector<8x8xf32> -> vector<8x8xf32>
    %cst_47 = arith.constant 0.176776692 : f32
    %83 = vector.broadcast %cst_47 : f32 to vector<8x8xf32>
    %84 = arith.mulf %82, %83 : vector<8x8xf32>
    %cst_48 = arith.constant 5.000000e-01 : f32
    %85 = vector.broadcast %cst_48 : f32 to vector<8x8xf32>
    %86 = arith.cmpf ogt, %3, %85 : vector<8x8xf32>
    %cst_49 = arith.constant -1.000000e+09 : f32
    %87 = vector.broadcast %cst_49 : f32 to vector<8x8xf32>
    %88 = arith.select %86, %87, %84 : vector<8x8xi1>, vector<8x8xf32>
    %cst_50 = arith.constant dense<0xFF800000> : vector<8xf32>
    %89 = vector.multi_reduction <maximumf>, %88, %cst_50 [1] : vector<8x8xf32> to vector<8xf32>
    %90 = vector.shape_cast %89 : vector<8xf32> to vector<8x1xf32>
    %91 = vector.broadcast %90 : vector<8x1xf32> to vector<8x8xf32>
    %92 = arith.subf %88, %91 : vector<8x8xf32>
    %93 = math.exp %92 : vector<8x8xf32>
    %cst_51 = arith.constant dense<0.000000e+00> : vector<8xf32>
    %94 = vector.multi_reduction <add>, %93, %cst_51 [1] : vector<8x8xf32> to vector<8xf32>
    %95 = vector.shape_cast %94 : vector<8xf32> to vector<8x1xf32>
    %96 = vector.broadcast %95 : vector<8x1xf32> to vector<8x8xf32>
    %97 = arith.divf %93, %96 : vector<8x8xf32>
    %c0_52 = arith.constant 0 : index
    %c2 = arith.constant 2 : index
    %c0_53 = arith.constant 0 : index
    %c0_54 = arith.constant 0 : index
    %98 = vector.load %arg14[%c0_52, %c2, %c0_53, %c0_54] : memref<1x4x8x8xf32, #tpu.memory_space<vmem>>, vector<1x1x8x8xf32>
    %99 = vector.shape_cast %98 : vector<1x1x8x8xf32> to vector<8x8xf32>
    %100 = vector.shape_cast %97 : vector<8x8xf32> to vector<1x1x8x8xf32>
    tpu.vector_store %arg14[%c0_52, %c2, %c0_53, %c0_54], %100 {strides = array<i32>} : memref<1x4x8x8xf32, #tpu.memory_space<vmem>>, vector<1x1x8x8xf32>,
    %101 = arith.truncf %97 : vector<8x8xf32> to vector<8x8xbf16>
    %102 = arith.truncf %79 : vector<8x32xf32> to vector<8x32xbf16>
    %cst_55 = arith.constant dense<0.000000e+00> : vector<8x32xf32>
    %103 = tpu.matmul %101, %102, %cst_55 {dimension_numbers = #tpu.dot_dimension_numbers<[1], [0], [0], [1], [0, 0, 1, 1], [], []>} : vector<8x8xbf16>, vector<8x32xbf16>, vector<8x32xf32> -> vector<8x32xf32>
    %104 = vector.extract_strided_slice %14 {offsets = [0, 96], sizes = [8, 32], strides = [1, 1]} : vector<8x128xf32> to vector<8x32xf32>
    %105 = vector.extract_strided_slice %18 {offsets = [0, 96], sizes = [8, 32], strides = [1, 1]} : vector<8x128xf32> to vector<8x32xf32>
    %106 = vector.extract_strided_slice %22 {offsets = [0, 96], sizes = [8, 32], strides = [1, 1]} : vector<8x128xf32> to vector<8x32xf32>
    %107 = arith.truncf %104 : vector<8x32xf32> to vector<8x32xbf16>
    %108 = arith.truncf %105 : vector<8x32xf32> to vector<8x32xbf16>
    %cst_56 = arith.constant dense<0.000000e+00> : vector<8x8xf32>
    %109 = tpu.matmul %107, %108, %cst_56 {dimension_numbers = #tpu.dot_dimension_numbers<[1], [1], [0], [0], [0, 0, 1, 0], [], []>} : vector<8x32xbf16>, vector<8x32xbf16>, vector<8x8xf32> -> vector<8x8xf32>
    %cst_57 = arith.constant 0.176776692 : f32
    %110 = vector.broadcast %cst_57 : f32 to vector<8x8xf32>
    %111 = arith.mulf %109, %110 : vector<8x8xf32>
    %cst_58 = arith.constant 5.000000e-01 : f32
    %112 = vector.broadcast %cst_58 : f32 to vector<8x8xf32>
    %113 = arith.cmpf ogt, %3, %112 : vector<8x8xf32>
    %cst_59 = arith.constant -1.000000e+09 : f32
    %114 = vector.broadcast %cst_59 : f32 to vector<8x8xf32>
    %115 = arith.select %113, %114, %111 : vector<8x8xi1>, vector<8x8xf32>
    %cst_60 = arith.constant dense<0xFF800000> : vector<8xf32>
    %116 = vector.multi_reduction <maximumf>, %115, %cst_60 [1] : vector<8x8xf32> to vector<8xf32>
    %117 = vector.shape_cast %116 : vector<8xf32> to vector<8x1xf32>
    %118 = vector.broadcast %117 : vector<8x1xf32> to vector<8x8xf32>
    %119 = arith.subf %115, %118 : vector<8x8xf32>
    %120 = math.exp %119 : vector<8x8xf32>
    %cst_61 = arith.constant dense<0.000000e+00> : vector<8xf32>
    %121 = vector.multi_reduction <add>, %120, %cst_61 [1] : vector<8x8xf32> to vector<8xf32>
    %122 = vector.shape_cast %121 : vector<8xf32> to vector<8x1xf32>
    %123 = vector.broadcast %122 : vector<8x1xf32> to vector<8x8xf32>
    %124 = arith.divf %120, %123 : vector<8x8xf32>
    %c0_62 = arith.constant 0 : index
    %c3 = arith.constant 3 : index
    %c0_63 = arith.constant 0 : index
    %c0_64 = arith.constant 0 : index
    %125 = vector.load %arg14[%c0_62, %c3, %c0_63, %c0_64] : memref<1x4x8x8xf32, #tpu.memory_space<vmem>>, vector<1x1x8x8xf32>
    %126 = vector.shape_cast %125 : vector<1x1x8x8xf32> to vector<8x8xf32>
    %127 = vector.shape_cast %124 : vector<8x8xf32> to vector<1x1x8x8xf32>
    tpu.vector_store %arg14[%c0_62, %c3, %c0_63, %c0_64], %127 {strides = array<i32>} : memref<1x4x8x8xf32, #tpu.memory_space<vmem>>, vector<1x1x8x8xf32>,
    %128 = arith.truncf %124 : vector<8x8xf32> to vector<8x8xbf16>
    %129 = arith.truncf %106 : vector<8x32xf32> to vector<8x32xbf16>
    %cst_65 = arith.constant dense<0.000000e+00> : vector<8x32xf32>
    %130 = tpu.matmul %128, %129, %cst_65 {dimension_numbers = #tpu.dot_dimension_numbers<[1], [0], [0], [1], [0, 0, 1, 1], [], []>} : vector<8x8xbf16>, vector<8x32xbf16>, vector<8x32xf32> -> vector<8x32xf32>
    %131 = tpu.concatenate %49, %76, %103, %130 in 1 : vector<8x32xf32>, vector<8x32xf32>, vector<8x32xf32>, vector<8x32xf32> -> vector<8x128xf32>
    %132 = arith.truncf %131 : vector<8x128xf32> to vector<8x128xbf16>
    %c0_66 = arith.constant 0 : index
    %c0_67 = arith.constant 0 : index
    %133 = vector.load %arg9[%c0_66, %c0_67] : memref<128x128xbf16, #tpu.memory_space<vmem>>, vector<128x128xbf16>
    %cst_68 = arith.constant dense<0.000000e+00> : vector<8x128xf32>
    %134 = tpu.matmul %132, %133, %cst_68 {dimension_numbers = #tpu.dot_dimension_numbers<[1], [0], [0], [1], [0, 0, 1, 1], [], []>} : vector<8x128xbf16>, vector<128x128xbf16>, vector<8x128xf32> -> vector<8x128xf32>
    %135 = vector.broadcast %7 : vector<1x128xf32> to vector<8x128xf32>
    %136 = arith.addf %134, %135 : vector<8x128xf32>
    %137 = arith.addf %136, %1 : vector<8x128xf32>
    %cst_69 = arith.constant dense<0.000000e+00> : vector<8xf32>
    %138 = vector.multi_reduction <add>, %137, %cst_69 [1] : vector<8x128xf32> to vector<8xf32>
    %139 = vector.shape_cast %138 : vector<8xf32> to vector<8x1xf32>
    %cst_70 = arith.constant 1.280000e+02 : f32
    %140 = vector.broadcast %cst_70 : f32 to vector<8x1xf32>
    %141 = arith.divf %139, %140 : vector<8x1xf32>
    %142 = vector.broadcast %141 : vector<8x1xf32> to vector<8x128xf32>
    %143 = arith.subf %137, %142 : vector<8x128xf32>
    %144 = arith.mulf %143, %143 : vector<8x128xf32>
    %cst_71 = arith.constant dense<0.000000e+00> : vector<8xf32>
    %145 = vector.multi_reduction <add>, %144, %cst_71 [1] : vector<8x128xf32> to vector<8xf32>
    %146 = vector.shape_cast %145 : vector<8xf32> to vector<8x1xf32>
    %cst_72 = arith.constant 1.280000e+02 : f32
    %147 = vector.broadcast %cst_72 : f32 to vector<8x1xf32>
    %148 = arith.divf %146, %147 : vector<8x1xf32>
    %cst_73 = arith.constant 9.99999974E-6 : f32
    %149 = vector.broadcast %cst_73 : f32 to vector<8x1xf32>
    %150 = arith.addf %148, %149 : vector<8x1xf32>
    %151 = math.rsqrt %150 : vector<8x1xf32>
    %152 = vector.broadcast %151 : vector<8x1xf32> to vector<8x128xf32>
    %153 = arith.mulf %143, %152 : vector<8x128xf32>
    %154 = vector.broadcast %8 : vector<1x128xf32> to vector<8x128xf32>
    %155 = arith.mulf %153, %154 : vector<8x128xf32>
    %156 = vector.broadcast %9 : vector<1x128xf32> to vector<8x128xf32>
    %157 = arith.addf %155, %156 : vector<8x128xf32>
    %c0_74 = arith.constant 0 : index
    %c0_75 = arith.constant 0 : index
    %c0_76 = arith.constant 0 : index
    %158 = vector.load %arg13[%c0_74, %c0_75, %c0_76] : memref<1x8x128xf32, #tpu.memory_space<vmem>>, vector<1x8x128xf32>
    %159 = vector.shape_cast %158 : vector<1x8x128xf32> to vector<8x128xf32>
    %160 = vector.shape_cast %157 : vector<8x128xf32> to vector<1x8x128xf32>
    tpu.vector_store %arg13[%c0_74, %c0_75, %c0_76], %160 {strides = array<i32>} : memref<1x8x128xf32, #tpu.memory_space<vmem>>, vector<1x8x128xf32>,
    return
  }
  func.func @transform_0(%arg0: i32) -> (i32, i32, i32) {
    %c0_i32 = arith.constant 0 : i32
    %c0_i32_0 = arith.constant 0 : i32
    %c0_i32_1 = arith.constant 0 : i32
    return %arg0, %c0_i32, %c0_i32_0 : i32, i32, i32
  }
  func.func @transform_1(%arg0: i32) -> (i32, i32, i32) {
    %c0_i32 = arith.constant 0 : i32
    %c0_i32_0 = arith.constant 0 : i32
    %c0_i32_1 = arith.constant 0 : i32
    return %arg0, %c0_i32, %c0_i32_0 : i32, i32, i32
  }
  func.func @transform_2(%arg0: i32) -> (i32, i32) {
    %c0_i32 = arith.constant 0 : i32
    %c0_i32_0 = arith.constant 0 : i32
    %c0_i32_1 = arith.constant 0 : i32
    return %c0_i32, %c0_i32_0 : i32, i32
  }
  func.func @transform_3(%arg0: i32) -> (i32, i32) {
    %c0_i32 = arith.constant 0 : i32
    %c0_i32_0 = arith.constant 0 : i32
    %c0_i32_1 = arith.constant 0 : i32
    return %c0_i32, %c0_i32_0 : i32, i32
  }
  func.func @transform_4(%arg0: i32) -> (i32, i32) {
    %c0_i32 = arith.constant 0 : i32
    %c0_i32_0 = arith.constant 0 : i32
    %c0_i32_1 = arith.constant 0 : i32
    return %c0_i32, %c0_i32_0 : i32, i32
  }
  func.func @transform_5(%arg0: i32) -> (i32, i32) {
    %c0_i32 = arith.constant 0 : i32
    %c0_i32_0 = arith.constant 0 : i32
    %c0_i32_1 = arith.constant 0 : i32
    return %c0_i32, %c0_i32_0 : i32, i32
  }
  func.func @transform_6(%arg0: i32) -> (i32, i32) {
    %c0_i32 = arith.constant 0 : i32
    %c0_i32_0 = arith.constant 0 : i32
    %c0_i32_1 = arith.constant 0 : i32
    return %c0_i32, %c0_i32_0 : i32, i32
  }
  func.func @transform_7(%arg0: i32) -> (i32, i32) {
    %c0_i32 = arith.constant 0 : i32
    %c0_i32_0 = arith.constant 0 : i32
    %c0_i32_1 = arith.constant 0 : i32
    return %c0_i32, %c0_i32_0 : i32, i32
  }
  func.func @transform_8(%arg0: i32) -> (i32, i32) {
    %c0_i32 = arith.constant 0 : i32
    %c0_i32_0 = arith.constant 0 : i32
    %c0_i32_1 = arith.constant 0 : i32
    return %c0_i32, %c0_i32_0 : i32, i32
  }
  func.func @transform_9(%arg0: i32) -> (i32, i32) {
    %c0_i32 = arith.constant 0 : i32
    %c0_i32_0 = arith.constant 0 : i32
    %c0_i32_1 = arith.constant 0 : i32
    return %c0_i32, %c0_i32_0 : i32, i32
  }
  func.func @transform_10(%arg0: i32) -> (i32, i32) {
    %c0_i32 = arith.constant 0 : i32
    %c0_i32_0 = arith.constant 0 : i32
    %c0_i32_1 = arith.constant 0 : i32
    return %c0_i32, %c0_i32_0 : i32, i32
  }
  func.func @transform_11(%arg0: i32) -> (i32, i32) {
    %c0_i32 = arith.constant 0 : i32
    %c0_i32_0 = arith.constant 0 : i32
    %c0_i32_1 = arith.constant 0 : i32
    return %c0_i32, %c0_i32_0 : i32, i32
  }
  func.func @transform_12(%arg0: i32) -> (i32, i32, i32) {
    %c0_i32 = arith.constant 0 : i32
    %c0_i32_0 = arith.constant 0 : i32
    %c0_i32_1 = arith.constant 0 : i32
    return %arg0, %c0_i32, %c0_i32_0 : i32, i32, i32
  }
  func.func @transform_13(%arg0: i32) -> (i32, i32, i32, i32) {
    %c0_i32 = arith.constant 0 : i32
    %c0_i32_0 = arith.constant 0 : i32
    %c0_i32_1 = arith.constant 0 : i32
    %c0_i32_2 = arith.constant 0 : i32
    return %arg0, %c0_i32, %c0_i32_0, %c0_i32_1 : i32, i32, i32, i32
  }
}

</mosaic_0001>

<llo_original>
// kernel: tpu_custom_call.1
$region0: #{tpu_custom_call.1}
  #allocation0 [shape = 'u32[]', space=smem, size = 0x4, offset = 0x4, fixed_abs, tag = 'smem constant byte address 0x4 - core index']
  #allocation1 [shape = 'u32[72,128]{1,0:T(1,128)}', space=vmem, size = 0x9000, scoped, tag = 'internal scratch']
  %s0 = inlined_call_operand.hbm [shape: f32[2,8,128], index: 0, kind: input, shape index: {}]
  %s1 = inlined_call_operand.hbm [shape: f32[2,8,8], index: 1, kind: input, shape index: {}]
  %s2 = inlined_call_operand.hbm [shape: bf16[128,128], index: 2, kind: input, shape index: {}]
  %s3 = inlined_call_operand.vmem [shape: f32[1,128], index: 3, kind: input, shape index: {}]
  %s4 = inlined_call_operand.hbm [shape: bf16[128,128], index: 4, kind: input, shape index: {}]
  %s5 = inlined_call_operand.vmem [shape: f32[1,128], index: 5, kind: input, shape index: {}]
  %s6 = inlined_call_operand.hbm [shape: bf16[128,128], index: 6, kind: input, shape index: {}]
  %s7 = inlined_call_operand.vmem [shape: f32[1,128], index: 7, kind: input, shape index: {}]
  %s8 = inlined_call_operand.hbm [shape: bf16[128,128], index: 8, kind: input, shape index: {}]
  %s9 = inlined_call_operand.vmem [shape: f32[1,128], index: 9, kind: input, shape index: {}]
  %s10 = inlined_call_operand.vmem [shape: f32[1,128], index: 10, kind: input, shape index: {}]
  %s11 = inlined_call_operand.vmem [shape: f32[1,128], index: 11, kind: input, shape index: {}]
  %s12 = inlined_call_operand.hbm [shape: f32[2,8,128], index: 12, kind: output, shape index: {0}]
  %s13 = inlined_call_operand.hbm [shape: f32[2,4,8,8], index: 13, kind: output, shape index: {1}]
  %14 = xla_tuple %s12, %s13
  %s15 = sld [smem:[#allocation0]]
  $region113: #{tpu_custom_call.1} parent=0
    _
  %s17 = ssub.s32 1, %s15
  %s18 = scalar_select 0, %s17, %s15
  $region1: #{tpu_custom_call.1} parent=0
    #allocation2 [shape = 'u8[8192]{0}', space=vmem, size = 0x2000, scoped, tag = 'input window, operand 0']
    #allocation3 [shape = 's32[2]{0}', space=sflag, size = 0x8, scoped, tag = 'scoped memory for tpu_custom_call.1']
    #allocation4 [shape = 's32[2]{0}', space=sflag, size = 0x8, scoped, tag = 'scoped memory for tpu_custom_call.1']
    #allocation5 [shape = 'u8[8192]{0}', space=vmem, size = 0x2000, scoped, tag = 'input window, operand 1']
    #allocation6 [shape = 's32[2]{0}', space=sflag, size = 0x8, scoped, tag = 'scoped memory for tpu_custom_call.1']
    #allocation7 [shape = 'u8[32768]{0}', space=vmem, size = 0x8000, scoped, tag = 'input window, operand 2, single buffered']
    #allocation8 [shape = 'u8[32768]{0}', space=vmem, size = 0x8000, scoped, tag = 'input window, operand 4, single buffered']
    #allocation9 [shape = 's32[1]{0}', space=sflag, size = 0x4, scoped, tag = 'scoped memory for tpu_custom_call.1']
    #allocation10 [shape = 'u8[32768]{0}', space=vmem, size = 0x8000, scoped, tag = 'input window, operand 6, single buffered']
    #allocation11 [shape = 'u8[32768]{0}', space=vmem, size = 0x8000, scoped, tag = 'input window, operand 8, single buffered']
    #allocation12 [shape = 's32[1]{0}', space=sflag, size = 0x4, scoped, tag = 'scoped memory for tpu_custom_call.1']
    #allocation13 [shape = 'u8[8192]{0}', space=vmem, size = 0x2000, scoped, tag = 'output window, operand 0']
    #allocation14 [shape = 'u8[32768]{0}', space=vmem, size = 0x8000, scoped, tag = 'output window, operand 1']
    #allocation15 [shape = 's32[2]{0}', space=sflag, size = 0x8, scoped, tag = 'scoped memory for tpu_custom_call.1']
    %19 = vsyncpa [#allocation3], 0
    %s20 = scalar_lea.sflag [#allocation3], 1
    %21 = vsyncpa %s20, 0
    %22 = vsyncpa [#allocation6], 0
    %s23 = scalar_lea.sflag [#allocation6], 1
    %24 = vsyncpa %s23, 0
    %25 = vsyncpa [#allocation9], 0
    %26 = vsyncpa [#allocation12], 0
    %27 = vsyncpa [#allocation4], 0
    %s28 = scalar_lea.sflag [#allocation4], 1
    %29 = vsyncpa %s28, 0
    %30 = vsyncpa [#allocation15], 0
    %s31 = scalar_lea.sflag [#allocation15], 1
    %32 = vsyncpa %s31, 0
    loop: start=0, step=1, limit=4
    $region2: #{tpu_custom_call.1} parent=1 // loop_pre_header
      _
    $region3: #{tpu_custom_call.1} parent=1 // loop_header
      %s34 = sphi 0, %s38
      %p35 = scmp.ge.s32.totalorder %s34, 4
      %s44 = sphi 0, %s46
      %s47 = sphi 0, %s44
      %s48 = sphi 0, %s47
      %s64 = sphi 0, %s48
      %s70 = sphi 0, %s72
      %s73 = sphi 0, %s70
      %s74 = sphi 0, %s73
      %s90 = sphi 0, %s74
      %s94 = sphi 0, %s94
      %s96 = sphi 0, %s94
      %s97 = sphi 0, %s96
      %s111 = sphi 0, %s97
      %s115 = sphi 0, %s115
      %s117 = sphi 0, %s115
      %s118 = sphi 0, %s117
      %s132 = sphi 0, %s118
      %s136 = sphi 0, %s136
      %s138 = sphi 0, %s136
      %s139 = sphi 0, %s138
      %s153 = sphi 0, %s139
      %s157 = sphi 0, %s157
      %s159 = sphi 0, %s157
      %s160 = sphi 0, %s159
      %s174 = sphi 0, %s160
      %s178 = sphi 0, %s178
      %s180 = sphi 0, %s178
      %s181 = sphi 0, %s180
      %s195 = sphi 0, %s181
      %s199 = sphi 0, %s199
      %s201 = sphi 0, %s199
      %s202 = sphi 0, %s201
      %s216 = sphi 0, %s202
      %s220 = sphi 0, %s220
      %s222 = sphi 0, %s220
      %s223 = sphi 0, %s222
      %s237 = sphi 0, %s223
      %s241 = sphi 0, %s241
      %s243 = sphi 0, %s241
      %s244 = sphi 0, %s243
      %s258 = sphi 0, %s244
      %s262 = sphi 0, %s262
      %s264 = sphi 0, %s262
      %s265 = sphi 0, %s264
      %s279 = sphi 0, %s265
      %s283 = sphi 0, %s283
      %s285 = sphi 0, %s283
      %s286 = sphi 0, %s285
      %s300 = sphi 0, %s286
      %s306 = sphi 0, %s308
      %s309 = sphi 0, %s306
      %s310 = sphi 0, %s309
      %s326 = sphi 0, %s310
      %s332 = sphi 0, %s334
      %s335 = sphi 0, %s332
      %s336 = sphi 0, %s335
      %s352 = sphi 0, %s336
    $region4: #{tpu_custom_call.1} parent=1 // loop_header_branch
      %37 = sbr.rel (%p35) target = $region8
    $region5: #{tpu_custom_call.1} parent=1 // loop_body
      %s39 = ssub.s32 %s34, 1
      %s40 = ssub.s32 %s34, 2
      %s41 = sadd.s32 %s34, 1
      %s42 = ssub.s32 %s34, %s41
      %p43 = scmp.eq.s32.totalorder %s42, 0
      %s45 = sadd.s32 %s44, 1
      %s46 = scalar_select %p43, %s44, %s45
      %p49 = pneg %p43
      %p50 = scmp.eq.s32.totalorder %s34, 1
      %p51 = por %p49, %p50
      %p52 = scmp.ne.s32.totalorder %s44, %s47
      %p53 = scmp.eq.s32.totalorder %s34, 0
      %p54 = por %p52, %p53
      %p55 = scmp.ne.s32.totalorder %s44, %s47
      %p56 = scmp.eq.s32.totalorder %s39, 1
      %p57 = por %p55, %p56
      %p58 = scmp.ne.s32.totalorder %s47, %s48
      %p59 = scmp.eq.s32.totalorder %s39, 0
      %p60 = por %p58, %p59
      %p61 = scmp.ne.s32.totalorder %s47, %s48
      %p62 = scmp.eq.s32.totalorder %s40, 1
      %p63 = por %p61, %p62
      %p65 = scmp.ne.s32.totalorder %s48, %s64
      %p66 = scmp.eq.s32.totalorder %s40, 0
      %p67 = por %p65, %p66
      %s68 = ssub.s32 %s34, %s41
      %p69 = scmp.eq.s32.totalorder %s68, 0
      %s71 = sadd.s32 %s70, 1
      %s72 = scalar_select %p69, %s70, %s71
      %p75 = pneg %p69
      %p76 = scmp.eq.s32.totalorder %s34, 1
      %p77 = por %p75, %p76
      %p78 = scmp.ne.s32.totalorder %s70, %s73
      %p79 = scmp.eq.s32.totalorder %s34, 0
      %p80 = por %p78, %p79
      %p81 = scmp.ne.s32.totalorder %s70, %s73
      %p82 = scmp.eq.s32.totalorder %s39, 1
      %p83 = por %p81, %p82
      %p84 = scmp.ne.s32.totalorder %s73, %s74
      %p85 = scmp.eq.s32.totalorder %s39, 0
      %p86 = por %p84, %p85
      %p87 = scmp.ne.s32.totalorder %s73, %s74
      %p88 = scmp.eq.s32.totalorder %s40, 1
      %p89 = por %p87, %p88
      %p91 = scmp.ne.s32.totalorder %s74, %s90
      %p92 = scmp.eq.s32.totalorder %s40, 0
      %p93 = por %p91, %p92
      %s95 = sadd.s32 %s94, 1
      %p98 = scmp.eq.s32.totalorder %s34, 1
      %p99 = scmp.ne.s32.totalorder %s94, %s96
      %p100 = scmp.eq.s32.totalorder %s34, 0
      %p101 = por %p99, %p100
      %p102 = scmp.ne.s32.totalorder %s94, %s96
      %p103 = scmp.eq.s32.totalorder %s39, 1
      %p104 = por %p102, %p103
      %p105 = scmp.ne.s32.totalorder %s96, %s97
      %p106 = scmp.eq.s32.totalorder %s39, 0
      %p107 = por %p105, %p106
      %p108 = scmp.ne.s32.totalorder %s96, %s97
      %p109 = scmp.eq.s32.totalorder %s40, 1
      %p110 = por %p108, %p109
      %p112 = scmp.ne.s32.totalorder %s97, %s111
      %p113 = scmp.eq.s32.totalorder %s40, 0
      %p114 = por %p112, %p113
      %s116 = sadd.s32 %s115, 1
      %p119 = scmp.eq.s32.totalorder %s34, 1
      %p120 = scmp.ne.s32.totalorder %s115, %s117
      %p121 = scmp.eq.s32.totalorder %s34, 0
      %p122 = por %p120, %p121
      %p123 = scmp.ne.s32.totalorder %s115, %s117
      %p124 = scmp.eq.s32.totalorder %s39, 1
      %p125 = por %p123, %p124
      %p126 = scmp.ne.s32.totalorder %s117, %s118
      %p127 = scmp.eq.s32.totalorder %s39, 0
      %p128 = por %p126, %p127
      %p129 = scmp.ne.s32.totalorder %s117, %s118
      %p130 = scmp.eq.s32.totalorder %s40, 1
      %p131 = por %p129, %p130
      %p133 = scmp.ne.s32.totalorder %s118, %s132
      %p134 = scmp.eq.s32.totalorder %s40, 0
      %p135 = por %p133, %p134
      %s137 = sadd.s32 %s136, 1
      %p140 = scmp.eq.s32.totalorder %s34, 1
      %p141 = scmp.ne.s32.totalorder %s136, %s138
      %p142 = scmp.eq.s32.totalorder %s34, 0
      %p143 = por %p141, %p142
      %p144 = scmp.ne.s32.totalorder %s136, %s138
      %p145 = scmp.eq.s32.totalorder %s39, 1
      %p146 = por %p144, %p145
      %p147 = scmp.ne.s32.totalorder %s138, %s139
      %p148 = scmp.eq.s32.totalorder %s39, 0
      %p149 = por %p147, %p148
      %p150 = scmp.ne.s32.totalorder %s138, %s139
      %p151 = scmp.eq.s32.totalorder %s40, 1
      %p152 = por %p150, %p151
      %p154 = scmp.ne.s32.totalorder %s139, %s153
      %p155 = scmp.eq.s32.totalorder %s40, 0
      %p156 = por %p154, %p155
      %s158 = sadd.s32 %s157, 1
      %p161 = scmp.eq.s32.totalorder %s34, 1
      %p162 = scmp.ne.s32.totalorder %s157, %s159
      %p163 = scmp.eq.s32.totalorder %s34, 0
      %p164 = por %p162, %p163
      %p165 = scmp.ne.s32.totalorder %s157, %s159
      %p166 = scmp.eq.s32.totalorder %s39, 1
      %p167 = por %p165, %p166
      %p168 = scmp.ne.s32.totalorder %s159, %s160
      %p169 = scmp.eq.s32.totalorder %s39, 0
      %p170 = por %p168, %p169
      %p171 = scmp.ne.s32.totalorder %s159, %s160
      %p172 = scmp.eq.s32.totalorder %s40, 1
      %p173 = por %p171, %p172
      %p175 = scmp.ne.s32.totalorder %s160, %s174
      %p176 = scmp.eq.s32.totalorder %s40, 0
      %p177 = por %p175, %p176
      %s179 = sadd.s32 %s178, 1
      %p182 = scmp.eq.s32.totalorder %s34, 1
      %p183 = scmp.ne.s32.totalorder %s178, %s180
      %p184 = scmp.eq.s32.totalorder %s34, 0
      %p185 = por %p183, %p184
      %p186 = scmp.ne.s32.totalorder %s178, %s180
      %p187 = scmp.eq.s32.totalorder %s39, 1
      %p188 = por %p186, %p187
      %p189 = scmp.ne.s32.totalorder %s180, %s181
      %p190 = scmp.eq.s32.totalorder %s39, 0
      %p191 = por %p189, %p190
      %p192 = scmp.ne.s32.totalorder %s180, %s181
      %p193 = scmp.eq.s32.totalorder %s40, 1
      %p194 = por %p192, %p193
      %p196 = scmp.ne.s32.totalorder %s181, %s195
      %p197 = scmp.eq.s32.totalorder %s40, 0
      %p198 = por %p196, %p197
      %s200 = sadd.s32 %s199, 1
      %p203 = scmp.eq.s32.totalorder %s34, 1
      %p204 = scmp.ne.s32.totalorder %s199, %s201
      %p205 = scmp.eq.s32.totalorder %s34, 0
      %p206 = por %p204, %p205
      %p207 = scmp.ne.s32.totalorder %s199, %s201
      %p208 = scmp.eq.s32.totalorder %s39, 1
      %p209 = por %p207, %p208
      %p210 = scmp.ne.s32.totalorder %s201, %s202
      %p211 = scmp.eq.s32.totalorder %s39, 0
      %p212 = por %p210, %p211
      %p213 = scmp.ne.s32.totalorder %s201, %s202
      %p214 = scmp.eq.s32.totalorder %s40, 1
      %p215 = por %p213, %p214
      %p217 = scmp.ne.s32.totalorder %s202, %s216
      %p218 = scmp.eq.s32.totalorder %s40, 0
      %p219 = por %p217, %p218
      %s221 = sadd.s32 %s220, 1
      %p224 = scmp.eq.s32.totalorder %s34, 1
      %p225 = scmp.ne.s32.totalorder %s220, %s222
      %p226 = scmp.eq.s32.totalorder %s34, 0
      %p227 = por %p225, %p226
      %p228 = scmp.ne.s32.totalorder %s220, %s222
      %p229 = scmp.eq.s32.totalorder %s39, 1
      %p230 = por %p228, %p229
      %p231 = scmp.ne.s32.totalorder %s222, %s223
      %p232 = scmp.eq.s32.totalorder %s39, 0
      %p233 = por %p231, %p232
      %p234 = scmp.ne.s32.totalorder %s222, %s223
      %p235 = scmp.eq.s32.totalorder %s40, 1
      %p236 = por %p234, %p235
      %p238 = scmp.ne.s32.totalorder %s223, %s237
      %p239 = scmp.eq.s32.totalorder %s40, 0
      %p240 = por %p238, %p239
      %s242 = sadd.s32 %s241, 1
      %p245 = scmp.eq.s32.totalorder %s34, 1
      %p246 = scmp.ne.s32.totalorder %s241, %s243
      %p247 = scmp.eq.s32.totalorder %s34, 0
      %p248 = por %p246, %p247
      %p249 = scmp.ne.s32.totalorder %s241, %s243
      %p250 = scmp.eq.s32.totalorder %s39, 1
      %p251 = por %p249, %p250
      %p252 = scmp.ne.s32.totalorder %s243, %s244
      %p253 = scmp.eq.s32.totalorder %s39, 0
      %p254 = por %p252, %p253
      %p255 = scmp.ne.s32.totalorder %s243, %s244
      %p256 = scmp.eq.s32.totalorder %s40, 1
      %p257 = por %p255, %p256
      %p259 = scmp.ne.s32.totalorder %s244, %s258
      %p260 = scmp.eq.s32.totalorder %s40, 0
      %p261 = por %p259, %p260
      %s263 = sadd.s32 %s262, 1
      %p266 = scmp.eq.s32.totalorder %s34, 1
      %p267 = scmp.ne.s32.totalorder %s262, %s264
      %p268 = scmp.eq.s32.totalorder %s34, 0
      %p269 = por %p267, %p268
      %p270 = scmp.ne.s32.totalorder %s262, %s264
      %p271 = scmp.eq.s32.totalorder %s39, 1
      %p272 = por %p270, %p271
      %p273 = scmp.ne.s32.totalorder %s264, %s265
      %p274 = scmp.eq.s32.totalorder %s39, 0
      %p275 = por %p273, %p274
      %p276 = scmp.ne.s32.totalorder %s264, %s265
      %p277 = scmp.eq.s32.totalorder %s40, 1
      %p278 = por %p276, %p277
      %p280 = scmp.ne.s32.totalorder %s265, %s279
      %p281 = scmp.eq.s32.totalorder %s40, 0
      %p282 = por %p280, %p281
      %s284 = sadd.s32 %s283, 1
      %p287 = scmp.eq.s32.totalorder %s34, 1
      %p288 = scmp.ne.s32.totalorder %s283, %s285
      %p289 = scmp.eq.s32.totalorder %s34, 0
      %p290 = por %p288, %p289
      %p291 = scmp.ne.s32.totalorder %s283, %s285
      %p292 = scmp.eq.s32.totalorder %s39, 1
      %p293 = por %p291, %p292
      %p294 = scmp.ne.s32.totalorder %s285, %s286
      %p295 = scmp.eq.s32.totalorder %s39, 0
      %p296 = por %p294, %p295
      %p297 = scmp.ne.s32.totalorder %s285, %s286
      %p298 = scmp.eq.s32.totalorder %s40, 1
      %p299 = por %p297, %p298
      %p301 = scmp.ne.s32.totalorder %s286, %s300
      %p302 = scmp.eq.s32.totalorder %s40, 0
      %p303 = por %p301, %p302
      %s304 = ssub.s32 %s34, %s41
      %p305 = scmp.eq.s32.totalorder %s304, 0
      %s307 = sadd.s32 %s306, 1
      %s308 = scalar_select %p305, %s306, %s307
      %p311 = pneg %p305
      %p312 = scmp.eq.s32.totalorder %s34, 1
      %p313 = por %p311, %p312
      %p314 = scmp.ne.s32.totalorder %s306, %s309
      %p315 = scmp.eq.s32.totalorder %s34, 0
      %p316 = por %p314, %p315
      %p317 = scmp.ne.s32.totalorder %s306, %s309
      %p318 = scmp.eq.s32.totalorder %s39, 1
      %p319 = por %p317, %p318
      %p320 = scmp.ne.s32.totalorder %s309, %s310
      %p321 = scmp.eq.s32.totalorder %s39, 0
      %p322 = por %p320, %p321
      %p323 = scmp.ne.s32.totalorder %s309, %s310
      %p324 = scmp.eq.s32.totalorder %s40, 1
      %p325 = por %p323, %p324
      %p327 = scmp.ne.s32.totalorder %s310, %s326
      %p328 = scmp.eq.s32.totalorder %s40, 0
      %p329 = por %p327, %p328
      %s330 = ssub.s32 %s34, %s41
      %p331 = scmp.eq.s32.totalorder %s330, 0
      %s333 = sadd.s32 %s332, 1
      %s334 = scalar_select %p331, %s332, %s333
      %p337 = pneg %p331
      %p338 = scmp.eq.s32.totalorder %s34, 1
      %p339 = por %p337, %p338
      %p340 = scmp.ne.s32.totalorder %s332, %s335
      %p341 = scmp.eq.s32.totalorder %s34, 0
      %p342 = por %p340, %p341
      %p343 = scmp.ne.s32.totalorder %s332, %s335
      %p344 = scmp.eq.s32.totalorder %s39, 1
      %p345 = por %p343, %p344
      %p346 = scmp.ne.s32.totalorder %s335, %s336
      %p347 = scmp.eq.s32.totalorder %s39, 0
      %p348 = por %p346, %p347
      %p349 = scmp.ne.s32.totalorder %s335, %s336
      %p350 = scmp.eq.s32.totalorder %s40, 1
      %p351 = por %p349, %p350
      %p353 = scmp.ne.s32.totalorder %s336, %s352
      %p354 = scmp.eq.s32.totalorder %s40, 0
      %p355 = por %p353, %p354
      %p356 = scmp.le.s32.totalorder 1, %s34
      %p357 = scmp.lt.s32.totalorder %s34, 3
      %p358 = pnand %p356, %p357
      %p359 = pneg %p358
      // Predicated region
      $region9: #{tpu_custom_call.1} parent=5 // pred_check
        _
      $region10: #{tpu_custom_call.1} parent=5 // pred_check_branch
        %361 = sbr.rel (%p358) target = $region12
      $region11: #{tpu_custom_call.1} parent=5 // pred_region
        %s362 = ssub.s32 %s34, 1
        // Predicated region
        $region13: #{tpu_custom_call.1} parent=11 // pred_check
          %p363 = pneg %p107
        $region14: #{tpu_custom_call.1} parent=11 // pred_check_branch
          %365 = sbr.rel (%p363) target = $region16
        $region15: #{tpu_custom_call.1} parent=11 // pred_region
          %367 = vsyncadd [#allocation6], 0
          %s368 = sshll.u32 %s2, 4
          %s369 = int_to_ptr.hbm [resolvable:$true] %s368
          %s370 = sshll.u32 [#allocation7], 4
          %s371 = int_to_ptr.vmem [resolvable:$true] %s370
          %376 = dma.hbm_to_vmem [thread:$0]  %s369, 1024, %s371, [#allocation6], 64, 64, 4
        $region16: #{tpu_custom_call.1} parent=11 // pred_fallthru
          _
        // Predicated region
        $region17: #{tpu_custom_call.1} parent=11 // pred_check
          %p377 = pneg %p128
        $region18: #{tpu_custom_call.1} parent=11 // pred_check_branch
          %379 = sbr.rel (%p377) target = $region20
        $region19: #{tpu_custom_call.1} parent=11 // pred_region
          _
        $region20: #{tpu_custom_call.1} parent=11 // pred_fallthru
          _
        // Predicated region
        $region21: #{tpu_custom_call.1} parent=11 // pred_check
          %p380 = pneg %p149
        $region22: #{tpu_custom_call.1} parent=11 // pred_check_branch
          %382 = sbr.rel (%p380) target = $region24
        $region23: #{tpu_custom_call.1} parent=11 // pred_region
          %384 = vsyncadd [#allocation9], 0
          %s385 = sshll.u32 %s4, 4
          %s386 = int_to_ptr.hbm [resolvable:$true] %s385
          %s387 = sshll.u32 [#allocation8], 4
          %s388 = int_to_ptr.vmem [resolvable:$true] %s387
          %393 = dma.hbm_to_vmem [thread:$0]  %s386, 1024, %s388, [#allocation9], 64, 64, 4
        $region24: #{tpu_custom_call.1} parent=11 // pred_fallthru
          _
        // Predicated region
        $region25: #{tpu_custom_call.1} parent=11 // pred_check
          %p394 = pneg %p170
        $region26: #{tpu_custom_call.1} parent=11 // pred_check_branch
          %396 = sbr.rel (%p394) target = $region28
        $region27: #{tpu_custom_call.1} parent=11 // pred_region
          _
        $region28: #{tpu_custom_call.1} parent=11 // pred_fallthru
          _
        // Predicated region
        $region29: #{tpu_custom_call.1} parent=11 // pred_check
          %p397 = pneg %p191
        $region30: #{tpu_custom_call.1} parent=11 // pred_check_branch
          %399 = sbr.rel (%p397) target = $region32
        $region31: #{tpu_custom_call.1} parent=11 // pred_region
          %401 = vsyncadd [#allocation9], 0
          %s402 = sshll.u32 %s6, 4
          %s403 = int_to_ptr.hbm [resolvable:$true] %s402
          %s404 = sshll.u32 [#allocation10], 4
          %s405 = int_to_ptr.vmem [resolvable:$true] %s404
          %410 = dma.hbm_to_vmem [thread:$0]  %s403, 1024, %s405, [#allocation9], 64, 64, 4
        $region32: #{tpu_custom_call.1} parent=11 // pred_fallthru
          _
        // Predicated region
        $region33: #{tpu_custom_call.1} parent=11 // pred_check
          %p411 = pneg %p212
        $region34: #{tpu_custom_call.1} parent=11 // pred_check_branch
          %413 = sbr.rel (%p411) target = $region36
        $region35: #{tpu_custom_call.1} parent=11 // pred_region
          _
        $region36: #{tpu_custom_call.1} parent=11 // pred_fallthru
          _
        // Predicated region
        $region37: #{tpu_custom_call.1} parent=11 // pred_check
          %p414 = pneg %p233
        $region38: #{tpu_custom_call.1} parent=11 // pred_check_branch
          %416 = sbr.rel (%p414) target = $region40
        $region39: #{tpu_custom_call.1} parent=11 // pred_region
          %418 = vsyncadd [#allocation12], 0
          %s419 = sshll.u32 %s8, 4
          %s420 = int_to_ptr.hbm [resolvable:$true] %s419
          %s421 = sshll.u32 [#allocation11], 4
          %s422 = int_to_ptr.vmem [resolvable:$true] %s421
          %427 = dma.hbm_to_vmem [thread:$0]  %s420, 1024, %s422, [#allocation12], 64, 64, 4
        $region40: #{tpu_custom_call.1} parent=11 // pred_fallthru
          _
        // Predicated region
        $region41: #{tpu_custom_call.1} parent=11 // pred_check
          %p428 = pneg %p254
        $region42: #{tpu_custom_call.1} parent=11 // pred_check_branch
          %430 = sbr.rel (%p428) target = $region44
        $region43: #{tpu_custom_call.1} parent=11 // pred_region
          _
        $region44: #{tpu_custom_call.1} parent=11 // pred_fallthru
          _
        // Predicated region
        $region45: #{tpu_custom_call.1} parent=11 // pred_check
          %p431 = pneg %p275
        $region46: #{tpu_custom_call.1} parent=11 // pred_check_branch
          %433 = sbr.rel (%p431) target = $region48
        $region47: #{tpu_custom_call.1} parent=11 // pred_region
          _
        $region48: #{tpu_custom_call.1} parent=11 // pred_fallthru
          _
        // Predicated region
        $region49: #{tpu_custom_call.1} parent=11 // pred_check
          %p434 = pneg %p296
        $region50: #{tpu_custom_call.1} parent=11 // pred_check_branch
          %436 = sbr.rel (%p434) target = $region52
        $region51: #{tpu_custom_call.1} parent=11 // pred_region
          _
        $region52: #{tpu_custom_call.1} parent=11 // pred_fallthru
          _
      $region12: #{tpu_custom_call.1} parent=5 // pred_fallthru
        _
      %p437 = scmp.lt.s32.totalorder %s34, 2
      // Predicated region
      $region53: #{tpu_custom_call.1} parent=5 // pred_check
        %p438 = pneg %p437
      $region54: #{tpu_custom_call.1} parent=5 // pred_check_branch
        %440 = sbr.rel (%p438) target = $region56
      $region55: #{tpu_custom_call.1} parent=5 // pred_region
        // Predicated region
        $region57: #{tpu_custom_call.1} parent=55 // pred_check
          %p441 = pneg %p54
        $region58: #{tpu_custom_call.1} parent=55 // pred_check_branch
          %443 = sbr.rel (%p441) target = $region60
        $region59: #{tpu_custom_call.1} parent=55 // pred_region
          %s444 = sand.u32 %s44, 1
          %s445 = scalar_lea.sflag [#allocation3], %s444
          %s446 = sand.u32 %s44, 1
          %s447 = smul.addr %s446, 8
          %s448 = scalar_lea.vmem [#allocation2], %s447
          %450 = vsyncadd %s445, 0
          %s451 = smul.addr %s34, 8
          %s452 = scalar_lea.hbm %s0, %s451
          %s454 = sshll.u32 %s452, 4
          %s455 = int_to_ptr.hbm [resolvable:$true] %s454
          %s456 = sshll.u32 %s448, 4
          %s457 = int_to_ptr.vmem [resolvable:$true] %s456
          %459 = dma.hbm_to_vmem [thread:$0]  %s455, 128, %s457, %s445
        $region60: #{tpu_custom_call.1} parent=55 // pred_fallthru
          _
        // Predicated region
        $region61: #{tpu_custom_call.1} parent=55 // pred_check
          %p460 = pneg %p80
        $region62: #{tpu_custom_call.1} parent=55 // pred_check_branch
          %462 = sbr.rel (%p460) target = $region64
        $region63: #{tpu_custom_call.1} parent=55 // pred_region
          %s463 = sand.u32 %s34, 1
          %s464 = scalar_lea.sflag [#allocation6], %s463
          %s465 = sand.u32 %s70, 1
          %s466 = smul.addr %s465, 8
          %s467 = scalar_lea.vmem [#allocation5], %s466
          %469 = vsyncadd %s464, 0
          %s470 = smul.addr %s34, 8
          %s471 = scalar_lea.hbm %s1, %s470
          %s473 = sshll.u32 %s471, 4
          %s474 = int_to_ptr.hbm [resolvable:$true] %s473
          %s475 = sshll.u32 %s467, 4
          %s476 = int_to_ptr.vmem [resolvable:$true] %s475
          %478 = dma.hbm_to_vmem [thread:$0]  %s474, 128, %s476, %s464
        $region64: #{tpu_custom_call.1} parent=55 // pred_fallthru
          _
      $region56: #{tpu_custom_call.1} parent=5 // pred_fallthru
        _
      %p479 = scmp.le.s32.totalorder 1, %s34
      %p480 = scmp.lt.s32.totalorder %s34, 3
      %p481 = pnand %p479, %p480
      %p482 = pneg %p481
      // Predicated region
      $region65: #{tpu_custom_call.1} parent=5 // pred_check
        _
      $region66: #{tpu_custom_call.1} parent=5 // pred_check_branch
        %484 = sbr.rel (%p481) target = $region68
      $region67: #{tpu_custom_call.1} parent=5 // pred_region
        %s485 = ssub.s32 %s34, 1
        %s486 = sand.u32 %s47, 1
        %s487 = scalar_lea.sflag [#allocation3], %s486
        %s488 = sand.u32 %s47, 1
        %s489 = smul.addr %s488, 8
        %s490 = scalar_lea.vmem [#allocation2], %s489
        // Predicated region
        $region69: #{tpu_custom_call.1} parent=67 // pred_check
          %p491 = pneg %p60
        $region70: #{tpu_custom_call.1} parent=67 // pred_check_branch
          %493 = sbr.rel (%p491) target = $region72
        $region71: #{tpu_custom_call.1} parent=67 // pred_region
          %495 = dma.done %s487, 128
        $region72: #{tpu_custom_call.1} parent=67 // pred_fallthru
          _
        %s496 = sand.u32 %s39, 1
        %s497 = scalar_lea.sflag [#allocation6], %s496
        %s498 = sand.u32 %s73, 1
        %s499 = smul.addr %s498, 8
        %s500 = scalar_lea.vmem [#allocation5], %s499
        // Predicated region
        $region73: #{tpu_custom_call.1} parent=67 // pred_check
          %p501 = pneg %p86
        $region74: #{tpu_custom_call.1} parent=67 // pred_check_branch
          %503 = sbr.rel (%p501) target = $region76
        $region75: #{tpu_custom_call.1} parent=67 // pred_region
          %505 = dma.done %s497, 128
        $region76: #{tpu_custom_call.1} parent=67 // pred_fallthru
          _
        // Predicated region
        $region77: #{tpu_custom_call.1} parent=67 // pred_check
          %p506 = pneg %p107
        $region78: #{tpu_custom_call.1} parent=67 // pred_check_branch
          %508 = sbr.rel (%p506) target = $region80
        $region79: #{tpu_custom_call.1} parent=67 // pred_region
          %510 = dma.done [#allocation6], 1024
        $region80: #{tpu_custom_call.1} parent=67 // pred_fallthru
          _
        // Predicated region
        $region81: #{tpu_custom_call.1} parent=67 // pred_check
          %p511 = pneg %p149
        $region82: #{tpu_custom_call.1} parent=67 // pred_check_branch
          %513 = sbr.rel (%p511) target = $region84
        $region83: #{tpu_custom_call.1} parent=67 // pred_region
          %515 = dma.done [#allocation9], 1024
        $region84: #{tpu_custom_call.1} parent=67 // pred_fallthru
          _
        // Predicated region
        $region85: #{tpu_custom_call.1} parent=67 // pred_check
          %p516 = pneg %p191
        $region86: #{tpu_custom_call.1} parent=67 // pred_check_branch
          %518 = sbr.rel (%p516) target = $region88
        $region87: #{tpu_custom_call.1} parent=67 // pred_region
          %520 = dma.done [#allocation9], 1024
        $region88: #{tpu_custom_call.1} parent=67 // pred_fallthru
          _
        // Predicated region
        $region89: #{tpu_custom_call.1} parent=67 // pred_check
          %p521 = pneg %p233
        $region90: #{tpu_custom_call.1} parent=67 // pred_check_branch
          %523 = sbr.rel (%p521) target = $region92
        $region91: #{tpu_custom_call.1} parent=67 // pred_region
          %525 = dma.done [#allocation12], 1024
        $region92: #{tpu_custom_call.1} parent=67 // pred_fallthru
          _
        %s526 = sand.u32 %s47, 1
        %s527 = scalar_lea.sflag [#allocation3], %s526
        %s528 = sand.u32 %s47, 1
        %s529 = smul.addr %s528, 8
        %s530 = scalar_lea.vmem [#allocation2], %s529
        %p531 = pneg %p60
        %p532 = pneg %p57
        %s533 = sand.u32 %s39, 1
        %s534 = scalar_lea.sflag [#allocation6], %s533
        %s535 = sand.u32 %s73, 1
        %s536 = smul.addr %s535, 8
        %s537 = scalar_lea.vmem [#allocation5], %s536
        %p538 = pneg %p86
        %p539 = pneg %p83
        %p540 = pneg %p107
        %p541 = pneg %p104
        %p542 = pneg %p128
        %p543 = pneg %p125
        %p544 = pneg %p149
        %p545 = pneg %p146
        %p546 = pneg %p170
        %p547 = pneg %p167
        %p548 = pneg %p191
        %p549 = pneg %p188
        %p550 = pneg %p212
        %p551 = pneg %p209
        %p552 = pneg %p233
        %p553 = pneg %p230
        %p554 = pneg %p254
        %p555 = pneg %p251
        %p556 = pneg %p275
        %p557 = pneg %p272
        %p558 = pneg %p296
        %p559 = pneg %p293
        %p560 = pneg %p322
        %p561 = pneg %p319
        %s562 = sand.u32 %s309, 1
        %s563 = scalar_lea.sflag [#allocation4], %s562
        %s564 = sand.u32 %s309, 1
        %s565 = smul.addr %s564, 8
        %s566 = scalar_lea.vmem [#allocation13], %s565
        %p567 = pneg %p348
        %p568 = pneg %p345
        %s569 = sand.u32 %s335, 1
        %s570 = scalar_lea.sflag [#allocation15], %s569
        %s571 = sand.u32 %s335, 1
        %s572 = smul.addr %s571, 32
        %s573 = scalar_lea.vmem [#allocation14], %s572
        %v575 = vld [vmem:[%s490] sm:$0xff]
        %v576 = vld [vmem:[%s500] sm:$0xff]
        %v577 = vld [vmem:[%s3] sm:$0x1]
        %v578 = vld [vmem:[%s5] sm:$0x1]
        %v579 = vld [vmem:[%s7] sm:$0x1]
        %v580 = vld [vmem:[%s9] sm:$0x1]
        %v581 = vld [vmem:[%s10] sm:$0x1]
        %v582 = vld [vmem:[%s11] sm:$0x1]
        %v583 = vpack.c.bf16 %v575, %v575
        %v584 = vld [vmem:[#allocation7] sm:$0xf]
        %v585 = vld [vmem:[#allocation7 + $0x4] sm:$0xf]
        %v586 = vld [vmem:[#allocation7 + $0x8] sm:$0xf]
        %v587 = vld [vmem:[#allocation7 + $0xc] sm:$0xf]
        %v588 = vld [vmem:[#allocation7 + $0x10] sm:$0xf]
        %v589 = vld [vmem:[#allocation7 + $0x14] sm:$0xf]
        %v590 = vld [vmem:[#allocation7 + $0x18] sm:$0xf]
        %v591 = vld [vmem:[#allocation7 + $0x1c] sm:$0xf]
        %v592 = vld [vmem:[#allocation7 + $0x20] sm:$0xf]
        %v593 = vld [vmem:[#allocation7 + $0x24] sm:$0xf]
        %v594 = vld [vmem:[#allocation7 + $0x28] sm:$0xf]
        %v595 = vld [vmem:[#allocation7 + $0x2c] sm:$0xf]
        %v596 = vld [vmem:[#allocation7 + $0x30] sm:$0xf]
        %v597 = vld [vmem:[#allocation7 + $0x34] sm:$0xf]
        %v598 = vld [vmem:[#allocation7 + $0x38] sm:$0xf]
        %v599 = vld [vmem:[#allocation7 + $0x3c] sm:$0xf]
        %v601 = vperm.slane %v577, 0
        %v619 = vunpack.c.l.b16 %v584
        %v620 = vunpack.c.l.b16 %v585
        %v621 = vunpack.c.l.b16 %v586
        %v622 = vunpack.c.l.b16 %v587
        %v623 = vunpack.c.l.b16 %v588
        %v624 = vunpack.c.l.b16 %v589
        %v625 = vunpack.c.l.b16 %v590
        %v626 = vunpack.c.l.b16 %v591
        %v627 = vunpack.c.l.b16 %v592
        %v628 = vunpack.c.l.b16 %v593
        %v629 = vunpack.c.l.b16 %v594
        %v630 = vunpack.c.l.b16 %v595
        %v631 = vunpack.c.l.b16 %v596
        %v632 = vunpack.c.l.b16 %v597
        %v633 = vunpack.c.l.b16 %v598
        %v634 = vunpack.c.l.b16 %v599
        %v635 = vpack.c.b16 %v620, %v619
        %v636 = vpack.c.b16 %v622, %v621
        %v637 = vpack.c.b16 %v624, %v623
        %v638 = vpack.c.b16 %v626, %v625
        %v639 = vpack.c.b16 %v628, %v627
        %v640 = vpack.c.b16 %v630, %v629
        %v641 = vpack.c.b16 %v632, %v631
        %v642 = vpack.c.b16 %v634, %v633
        %651 = vmatpush.bf16.msra.mxu0 %v642
        %652 = vmatpush.bf16.msra.mxu0 %v641
        %653 = vmatpush.bf16.msra.mxu0 %v640
        %654 = vmatpush.bf16.msra.mxu0 %v639
        %655 = vmatpush.bf16.msra.mxu0 %v638
        %656 = vmatpush.bf16.msra.mxu0 %v637
        %657 = vmatpush.bf16.msra.mxu0 %v636
        %658 = vmatpush.bf16.msra.mxu0 %v635
        %659 = vmatmul.bf16.gmra.mxu0 %v583
        %v660 = vpop.f32.mrf.mxu0
        %v661 = vadd.f32 %v601, %v660
        %v662 = vpop.f32.mrf.mxu0
        %663 = vdwg.mxu0
        %v664 = vld [vmem:[#allocation8] sm:$0xf]
        %v665 = vld [vmem:[#allocation8 + $0x4] sm:$0xf]
        %v666 = vld [vmem:[#allocation8 + $0x8] sm:$0xf]
        %v667 = vld [vmem:[#allocation8 + $0xc] sm:$0xf]
        %v668 = vld [vmem:[#allocation8 + $0x10] sm:$0xf]
        %v669 = vld [vmem:[#allocation8 + $0x14] sm:$0xf]
        %v670 = vld [vmem:[#allocation8 + $0x18] sm:$0xf]
        %v671 = vld [vmem:[#allocation8 + $0x1c] sm:$0xf]
        %v672 = vld [vmem:[#allocation8 + $0x20] sm:$0xf]
        %v673 = vld [vmem:[#allocation8 + $0x24] sm:$0xf]
        %v674 = vld [vmem:[#allocation8 + $0x28] sm:$0xf]
        %v675 = vld [vmem:[#allocation8 + $0x2c] sm:$0xf]
        %v676 = vld [vmem:[#allocation8 + $0x30] sm:$0xf]
        %v677 = vld [vmem:[#allocation8 + $0x34] sm:$0xf]
        %v678 = vld [vmem:[#allocation8 + $0x38] sm:$0xf]
        %v679 = vld [vmem:[#allocation8 + $0x3c] sm:$0xf]
        %v681 = vperm.slane %v578, 0
        %v699 = vunpack.c.l.b16 %v664
        %v700 = vunpack.c.l.b16 %v665
        %v701 = vunpack.c.l.b16 %v666
        %v702 = vunpack.c.l.b16 %v667
        %v703 = vunpack.c.l.b16 %v668
        %v704 = vunpack.c.l.b16 %v669
        %v705 = vunpack.c.l.b16 %v670
        %v706 = vunpack.c.l.b16 %v671
        %v707 = vunpack.c.l.b16 %v672
        %v708 = vunpack.c.l.b16 %v673
        %v709 = vunpack.c.l.b16 %v674
        %v710 = vunpack.c.l.b16 %v675
        %v711 = vunpack.c.l.b16 %v676
        %v712 = vunpack.c.l.b16 %v677
        %v713 = vunpack.c.l.b16 %v678
        %v714 = vunpack.c.l.b16 %v679
        %v715 = vpack.c.b16 %v700, %v699
        %v716 = vpack.c.b16 %v702, %v701
        %v717 = vpack.c.b16 %v704, %v703
        %v718 = vpack.c.b16 %v706, %v705
        %v719 = vpack.c.b16 %v708, %v707
        %v720 = vpack.c.b16 %v710, %v709
        %v721 = vpack.c.b16 %v712, %v711
        %v722 = vpack.c.b16 %v714, %v713
        %731 = vmatpush.bf16.msra.mxu0 %v722
        %732 = vmatpush.bf16.msra.mxu0 %v721
        %733 = vmatpush.bf16.msra.mxu0 %v720
        %734 = vmatpush.bf16.msra.mxu0 %v719
        %735 = vmatpush.bf16.msra.mxu0 %v718
        %736 = vmatpush.bf16.msra.mxu0 %v717
        %737 = vmatpush.bf16.msra.mxu0 %v716
        %738 = vmatpush.bf16.msra.mxu0 %v715
        %739 = vmatmul.bf16.gmra.mxu0 %v583
        %v740 = vpop.f32.mrf.mxu0
        %v741 = vadd.f32 %v681, %v740
        %v742 = vpop.f32.mrf.mxu0
        %743 = vdwg.mxu0
        %v744 = vld [vmem:[#allocation10] sm:$0xf]
        %v745 = vld [vmem:[#allocation10 + $0x4] sm:$0xf]
        %v746 = vld [vmem:[#allocation10 + $0x8] sm:$0xf]
        %v747 = vld [vmem:[#allocation10 + $0xc] sm:$0xf]
        %v748 = vld [vmem:[#allocation10 + $0x10] sm:$0xf]
        %v749 = vld [vmem:[#allocation10 + $0x14] sm:$0xf]
        %v750 = vld [vmem:[#allocation10 + $0x18] sm:$0xf]
        %v751 = vld [vmem:[#allocation10 + $0x1c] sm:$0xf]
        %v752 = vld [vmem:[#allocation10 + $0x20] sm:$0xf]
        %v753 = vld [vmem:[#allocation10 + $0x24] sm:$0xf]
        %v754 = vld [vmem:[#allocation10 + $0x28] sm:$0xf]
        %v755 = vld [vmem:[#allocation10 + $0x2c] sm:$0xf]
        %v756 = vld [vmem:[#allocation10 + $0x30] sm:$0xf]
        %v757 = vld [vmem:[#allocation10 + $0x34] sm:$0xf]
        %v758 = vld [vmem:[#allocation10 + $0x38] sm:$0xf]
        %v759 = vld [vmem:[#allocation10 + $0x3c] sm:$0xf]
        %v761 = vperm.slane %v579, 0
        %v779 = vunpack.c.l.b16 %v744
        %v780 = vunpack.c.l.b16 %v745
        %v781 = vunpack.c.l.b16 %v746
        %v782 = vunpack.c.l.b16 %v747
        %v783 = vunpack.c.l.b16 %v748
        %v784 = vunpack.c.l.b16 %v749
        %v785 = vunpack.c.l.b16 %v750
        %v786 = vunpack.c.l.b16 %v751
        %v787 = vunpack.c.l.b16 %v752
        %v788 = vunpack.c.l.b16 %v753
        %v789 = vunpack.c.l.b16 %v754
        %v790 = vunpack.c.l.b16 %v755
        %v791 = vunpack.c.l.b16 %v756
        %v792 = vunpack.c.l.b16 %v757
        %v793 = vunpack.c.l.b16 %v758
        %v794 = vunpack.c.l.b16 %v759
        %v795 = vpack.c.b16 %v780, %v779
        %v796 = vpack.c.b16 %v782, %v781
        %v797 = vpack.c.b16 %v784, %v783
        %v798 = vpack.c.b16 %v786, %v785
        %v799 = vpack.c.b16 %v788, %v787
        %v800 = vpack.c.b16 %v790, %v789
        %v801 = vpack.c.b16 %v792, %v791
        %v802 = vpack.c.b16 %v794, %v793
        %811 = vmatpush.bf16.msra.mxu0 %v802
        %812 = vmatpush.bf16.msra.mxu0 %v801
        %813 = vmatpush.bf16.msra.mxu0 %v800
        %814 = vmatpush.bf16.msra.mxu0 %v799
        %815 = vmatpush.bf16.msra.mxu0 %v798
        %816 = vmatpush.bf16.msra.mxu0 %v797
        %817 = vmatpush.bf16.msra.mxu0 %v796
        %818 = vmatpush.bf16.msra.mxu0 %v795
        %819 = vmatmul.bf16.gmra.mxu0 %v583
        %v820 = vpop.f32.mrf.mxu0
        %v821 = vadd.f32 %v761, %v820
        %v822 = vpop.f32.mrf.mxu0
        %823 = vdwg.mxu0
        %v824 = vpack.c.bf16 %v661, %v661
        %v825 = vpack.c.bf16 %v741, %v741
        %vm826 = vcmask 261120
        %v828 = vsel %vm826, %v824, 0
        %v831 = vsel %vm826, %v825, 0
        %833 = vmatpush.bf16.xpose.msra.mxu0 0
        %834 = vmatpush.bf16.xpose.msra.mxu0 0
        %835 = vmatpush.bf16.xpose.msra.mxu0 0
        %836 = vmatpush.bf16.xpose.msra.mxu0 0
        %837 = vmatpush.bf16.xpose.msra.mxu0 0
        %838 = vmatpush.bf16.xpose.msra.mxu0 0
        %839 = vmatpush.bf16.xpose.msra.mxu0 0
        %840 = vmatpush.bf16.xpose.msra.mxu0 %v831
        %841 = vmatmul.bf16.gmra.mxu0 %v828
        %v842 = vpop.f32.mrf.mxu0
        %v843 = vadd.f32 0.0, %v842
        %v844 = vpop.f32.mrf.mxu0
        %845 = vdwg.mxu0
        %v846 = vmul.f32 %v843, 0.17677669
        %vm847 = vcmp.gt.f32.partialorder %v576, 0.5
        %v848 = vsel %vm847, -1e+09, %v846
        %vm849 = vcmask 64512
        %v850 = vsel %vm849, %v848, -inf
        %851 = vmax.xlane.f32.xlu0 %v850
        %v852 = vpop.xlane.xlu0 %851
        %v853 = vsub.f32 %v848, %v852
        %v854 = vmul.f32 %v853, 1.442695
        %v855 = vpow.pop %v854
        %v856 = vsel %vm849, %v855, 0.0
        %857 = vadd.xlane.f32.xlu0 %v856
        %v858 = vpop.xlane.xlu0 %857
        %v859 = vrcp.pop %v858
        %v860 = vmul.f32 %v858, %v859
        %v861 = vsub.f32 1.0, %v860
        %v862 = vmul.f32 %v859, %v861
        %v863 = vadd.f32 %v859, %v862
        %vm864 = vweird.f32 %v858
        %vm865 = vweird.f32 %v859
        %vm866 = vmor %vm864, %vm865
        %v867 = vsel %vm866, %v859, %v863
        %v868 = vand.u32 2147483647, %v858
        %vm869 = vcmp.eq.f32.partialorder %v868, 8.507059e+37
        %v870 = vand.u32 %v858, 2147483648
        %v871 = vor.u32 1.1754944e-38, %v870
        %v872 = vsel %vm869, %v871, %v867
        %v873 = vmul.f32 %v855, %v872
        %874 = vst.msk [vmem:[%s573] sm:$0xff] %vm849, %v873
        %v875 = vpack.c.bf16 %v873, %v873
        %v876 = vpack.c.bf16 %v821, %v821
        %v878 = vsel %vm849, %v875, 0
        %vm880 = vcmask 1043456
        %v882 = vsel %vm880, %v876, 0
        %884 = vmatpush.bf16.msra.mxu0 0
        %885 = vmatpush.bf16.msra.mxu0 0
        %886 = vmatpush.bf16.msra.mxu0 0
        %887 = vmatpush.bf16.msra.mxu0 0
        %888 = vmatpush.bf16.msra.mxu0 0
        %889 = vmatpush.bf16.msra.mxu0 0
        %890 = vmatpush.bf16.msra.mxu0 0
        %891 = vmatpush.bf16.msra.mxu0 %v882
        %892 = vmatmul.bf16.gmra.mxu0 %v878
        %v893 = vpop.f32.mrf.mxu0
        %v894 = vadd.f32 0.0, %v893
        %v895 = vpop.f32.mrf.mxu0
        %896 = vdwg.mxu0
        %898 = vrot.lane.b32.xlu0 %v824, 96
        %v899 = vpop.permute.xlu0 %898
        %901 = vrot.lane.b32.xlu0 %v825, 96
        %v902 = vpop.permute.xlu0 %901
        %v904 = vsel %vm826, %v899, 0
        %v907 = vsel %vm826, %v902, 0
        %909 = vmatpush.bf16.xpose.msra.mxu0 0
        %910 = vmatpush.bf16.xpose.msra.mxu0 0
        %911 = vmatpush.bf16.xpose.msra.mxu0 0
        %912 = vmatpush.bf16.xpose.msra.mxu0 0
        %913 = vmatpush.bf16.xpose.msra.mxu0 0
        %914 = vmatpush.bf16.xpose.msra.mxu0 0
        %915 = vmatpush.bf16.xpose.msra.mxu0 0
        %916 = vmatpush.bf16.xpose.msra.mxu0 %v907
        %917 = vmatmul.bf16.gmra.mxu0 %v904
        %v918 = vpop.f32.mrf.mxu0
        %v919 = vadd.f32 0.0, %v918
        %v920 = vpop.f32.mrf.mxu0
        %921 = vdwg.mxu0
        %v922 = vmul.f32 %v919, 0.17677669
        %v923 = vsel %vm847, -1e+09, %v922
        %v924 = vsel %vm849, %v923, -inf
        %925 = vmax.xlane.f32.xlu0 %v924
        %v926 = vpop.xlane.xlu0 %925
        %v927 = vsub.f32 %v923, %v926
        %v928 = vmul.f32 %v927, 1.442695
        %v929 = vpow.pop %v928
        %v930 = vsel %vm849, %v929, 0.0
        %931 = vadd.xlane.f32.xlu0 %v930
        %v932 = vpop.xlane.xlu0 %931
        %v933 = vrcp.pop %v932
        %v934 = vmul.f32 %v932, %v933
        %v935 = vsub.f32 1.0, %v934
        %v936 = vmul.f32 %v933, %v935
        %v937 = vadd.f32 %v933, %v936
        %vm938 = vweird.f32 %v932
        %vm939 = vweird.f32 %v933
        %vm940 = vmor %vm938, %vm939
        %v941 = vsel %vm940, %v933, %v937
        %v942 = vand.u32 2147483647, %v932
        %vm943 = vcmp.eq.f32.partialorder %v942, 8.507059e+37
        %v944 = vand.u32 %v932, 2147483648
        %v945 = vor.u32 1.1754944e-38, %v944
        %v946 = vsel %vm943, %v945, %v941
        %v947 = vmul.f32 %v929, %v946
        %s948 = scalar_lea.vmem %s573, 8 [#allocation14]
        %949 = vst.msk [vmem:[%s948] sm:$0xff] %vm849, %v947
        %v950 = vpack.c.bf16 %v947, %v947
        %952 = vrot.lane.b32.xlu0 %v876, 96
        %v953 = vpop.permute.xlu0 %952
        %v955 = vsel %vm849, %v950, 0
        %v958 = vsel %vm880, %v953, 0
        %960 = vmatpush.bf16.msra.mxu0 0
        %961 = vmatpush.bf16.msra.mxu0 0
        %962 = vmatpush.bf16.msra.mxu0 0
        %963 = vmatpush.bf16.msra.mxu0 0
        %964 = vmatpush.bf16.msra.mxu0 0
        %965 = vmatpush.bf16.msra.mxu0 0
        %966 = vmatpush.bf16.msra.mxu0 0
        %967 = vmatpush.bf16.msra.mxu0 %v958
        %968 = vmatmul.bf16.gmra.mxu0 %v955
        %v969 = vpop.f32.mrf.mxu0
        %v970 = vadd.f32 0.0, %v969
        %v971 = vpop.f32.mrf.mxu0
        %972 = vdwg.mxu0
        %973 = vrot.lane.b32.xlu0 %v824, 64
        %v974 = vpop.permute.xlu0 %973
        %975 = vrot.lane.b32.xlu0 %v825, 64
        %v976 = vpop.permute.xlu0 %975
        %v978 = vsel %vm826, %v974, 0
        %v981 = vsel %vm826, %v976, 0
        %983 = vmatpush.bf16.xpose.msra.mxu0 0
        %984 = vmatpush.bf16.xpose.msra.mxu0 0
        %985 = vmatpush.bf16.xpose.msra.mxu0 0
        %986 = vmatpush.bf16.xpose.msra.mxu0 0
        %987 = vmatpush.bf16.xpose.msra.mxu0 0
        %988 = vmatpush.bf16.xpose.msra.mxu0 0
        %989 = vmatpush.bf16.xpose.msra.mxu0 0
        %990 = vmatpush.bf16.xpose.msra.mxu0 %v981
        %991 = vmatmul.bf16.gmra.mxu0 %v978
        %v992 = vpop.f32.mrf.mxu0
        %v993 = vadd.f32 0.0, %v992
        %v994 = vpop.f32.mrf.mxu0
        %995 = vdwg.mxu0
        %v996 = vmul.f32 %v993, 0.17677669
        %v997 = vsel %vm847, -1e+09, %v996
        %v998 = vsel %vm849, %v997, -inf
        %999 = vmax.xlane.f32.xlu0 %v998
        %v1000 = vpop.xlane.xlu0 %999
        %v1001 = vsub.f32 %v997, %v1000
        %v1002 = vmul.f32 %v1001, 1.442695
        %v1003 = vpow.pop %v1002
        %v1004 = vsel %vm849, %v1003, 0.0
        %1005 = vadd.xlane.f32.xlu0 %v1004
        %v1006 = vpop.xlane.xlu0 %1005
        %v1007 = vrcp.pop %v1006
        %v1008 = vmul.f32 %v1006, %v1007
        %v1009 = vsub.f32 1.0, %v1008
        %v1010 = vmul.f32 %v1007, %v1009
        %v1011 = vadd.f32 %v1007, %v1010
        %vm1012 = vweird.f32 %v1006
        %vm1013 = vweird.f32 %v1007
        %vm1014 = vmor %vm1012, %vm1013
        %v1015 = vsel %vm1014, %v1007, %v1011
        %v1016 = vand.u32 2147483647, %v1006
        %vm1017 = vcmp.eq.f32.partialorder %v1016, 8.507059e+37
        %v1018 = vand.u32 %v1006, 2147483648
        %v1019 = vor.u32 1.1754944e-38, %v1018
        %v1020 = vsel %vm1017, %v1019, %v1015
        %v1021 = vmul.f32 %v1003, %v1020
        %s1022 = scalar_lea.vmem %s573, 16 [#allocation14]
        %1023 = vst.msk [vmem:[%s1022] sm:$0xff] %vm849, %v1021
        %v1024 = vpack.c.bf16 %v1021, %v1021
        %1025 = vrot.lane.b32.xlu0 %v876, 64
        %v1026 = vpop.permute.xlu0 %1025
        %v1028 = vsel %vm849, %v1024, 0
        %v1031 = vsel %vm880, %v1026, 0
        %1033 = vmatpush.bf16.msra.mxu0 0
        %1034 = vmatpush.bf16.msra.mxu0 0
        %1035 = vmatpush.bf16.msra.mxu0 0
        %1036 = vmatpush.bf16.msra.mxu0 0
        %1037 = vmatpush.bf16.msra.mxu0 0
        %1038 = vmatpush.bf16.msra.mxu0 0
        %1039 = vmatpush.bf16.msra.mxu0 0
        %1040 = vmatpush.bf16.msra.mxu0 %v1031
        %1041 = vmatmul.bf16.gmra.mxu0 %v1028
        %v1042 = vpop.f32.mrf.mxu0
        %v1043 = vadd.f32 0.0, %v1042
        %v1044 = vpop.f32.mrf.mxu0
        %1045 = vdwg.mxu0
        %1046 = vrot.lane.b32.xlu0 %v824, 32
        %v1047 = vpop.permute.xlu0 %1046
        %1048 = vrot.lane.b32.xlu0 %v825, 32
        %v1049 = vpop.permute.xlu0 %1048
        %v1051 = vsel %vm826, %v1047, 0
        %v1054 = vsel %vm826, %v1049, 0
        %1056 = vmatpush.bf16.xpose.msra.mxu0 0
        %1057 = vmatpush.bf16.xpose.msra.mxu0 0
        %1058 = vmatpush.bf16.xpose.msra.mxu0 0
        %1059 = vmatpush.bf16.xpose.msra.mxu0 0
        %1060 = vmatpush.bf16.xpose.msra.mxu0 0
        %1061 = vmatpush.bf16.xpose.msra.mxu0 0
        %1062 = vmatpush.bf16.xpose.msra.mxu0 0
        %1063 = vmatpush.bf16.xpose.msra.mxu0 %v1054
        %1064 = vmatmul.bf16.gmra.mxu0 %v1051
        %v1065 = vpop.f32.mrf.mxu0
        %v1066 = vadd.f32 0.0, %v1065
        %v1067 = vpop.f32.mrf.mxu0
        %1068 = vdwg.mxu0
        %v1069 = vmul.f32 %v1066, 0.17677669
        %v1070 = vsel %vm847, -1e+09, %v1069
        %v1071 = vsel %vm849, %v1070, -inf
        %1072 = vmax.xlane.f32.xlu0 %v1071
        %v1073 = vpop.xlane.xlu0 %1072
        %v1074 = vsub.f32 %v1070, %v1073
        %v1075 = vmul.f32 %v1074, 1.442695
        %v1076 = vpow.pop %v1075
        %v1077 = vsel %vm849, %v1076, 0.0
        %1078 = vadd.xlane.f32.xlu0 %v1077
        %v1079 = vpop.xlane.xlu0 %1078
        %v1080 = vrcp.pop %v1079
        %v1081 = vmul.f32 %v1079, %v1080
        %v1082 = vsub.f32 1.0, %v1081
        %v1083 = vmul.f32 %v1080, %v1082
        %v1084 = vadd.f32 %v1080, %v1083
        %vm1085 = vweird.f32 %v1079
        %vm1086 = vweird.f32 %v1080
        %vm1087 = vmor %vm1085, %vm1086
        %v1088 = vsel %vm1087, %v1080, %v1084
        %v1089 = vand.u32 2147483647, %v1079
        %vm1090 = vcmp.eq.f32.partialorder %v1089, 8.507059e+37
        %v1091 = vand.u32 %v1079, 2147483648
        %v1092 = vor.u32 1.1754944e-38, %v1091
        %v1093 = vsel %vm1090, %v1092, %v1088
        %v1094 = vmul.f32 %v1076, %v1093
        %s1095 = scalar_lea.vmem %s573, 24 [#allocation14]
        %1096 = vst.msk [vmem:[%s1095] sm:$0xff] %vm849, %v1094
        %v1097 = vpack.c.bf16 %v1094, %v1094
        %1098 = vrot.lane.b32.xlu0 %v876, 32
        %v1099 = vpop.permute.xlu0 %1098
        %v1101 = vsel %vm849, %v1097, 0
        %v1104 = vsel %vm880, %v1099, 0
        %1106 = vmatpush.bf16.msra.mxu0 0
        %1107 = vmatpush.bf16.msra.mxu0 0
        %1108 = vmatpush.bf16.msra.mxu0 0
        %1109 = vmatpush.bf16.msra.mxu0 0
        %1110 = vmatpush.bf16.msra.mxu0 0
        %1111 = vmatpush.bf16.msra.mxu0 0
        %1112 = vmatpush.bf16.msra.mxu0 0
        %1113 = vmatpush.bf16.msra.mxu0 %v1104
        %1114 = vmatmul.bf16.gmra.mxu0 %v1101
        %v1115 = vpop.f32.mrf.mxu0
        %v1116 = vadd.f32 0.0, %v1115
        %v1117 = vpop.f32.mrf.mxu0
        %1118 = vdwg.mxu0
        %1120 = vrot.lane.b32.xlu0 %v970, 32
        %v1121 = vpop.permute.xlu0 %1120
        %1124 = vrot.lane.b32.xlu0 %v1043, 64
        %v1125 = vpop.permute.xlu0 %1124
        %1128 = vrot.lane.b32.xlu0 %v1116, 96
        %v1129 = vpop.permute.xlu0 %1128
        %v1131 = vsel %vm826, %v894, %v1121
        %vm1132 = vcmask 523264
        %v1133 = vsel %vm1132, %v1131, %v1125
        %vm1134 = vcmask 785408
        %v1135 = vsel %vm1134, %v1133, %v1129
        %v1136 = vpack.c.bf16 %v1135, %v1135
        %v1137 = vld [vmem:[#allocation11] sm:$0xf]
        %v1138 = vld [vmem:[#allocation11 + $0x4] sm:$0xf]
        %v1139 = vld [vmem:[#allocation11 + $0x8] sm:$0xf]
        %v1140 = vld [vmem:[#allocation11 + $0xc] sm:$0xf]
        %v1141 = vld [vmem:[#allocation11 + $0x10] sm:$0xf]
        %v1142 = vld [vmem:[#allocation11 + $0x14] sm:$0xf]
        %v1143 = vld [vmem:[#allocation11 + $0x18] sm:$0xf]
        %v1144 = vld [vmem:[#allocation11 + $0x1c] sm:$0xf]
        %v1145 = vld [vmem:[#allocation11 + $0x20] sm:$0xf]
        %v1146 = vld [vmem:[#allocation11 + $0x24] sm:$0xf]
        %v1147 = vld [vmem:[#allocation11 + $0x28] sm:$0xf]
        %v1148 = vld [vmem:[#allocation11 + $0x2c] sm:$0xf]
        %v1149 = vld [vmem:[#allocation11 + $0x30] sm:$0xf]
        %v1150 = vld [vmem:[#allocation11 + $0x34] sm:$0xf]
        %v1151 = vld [vmem:[#allocation11 + $0x38] sm:$0xf]
        %v1152 = vld [vmem:[#allocation11 + $0x3c] sm:$0xf]
        %v1154 = vperm.slane %v580, 0
        %v1172 = vunpack.c.l.b16 %v1137
        %v1173 = vunpack.c.l.b16 %v1138
        %v1174 = vunpack.c.l.b16 %v1139
        %v1175 = vunpack.c.l.b16 %v1140
        %v1176 = vunpack.c.l.b16 %v1141
        %v1177 = vunpack.c.l.b16 %v1142
        %v1178 = vunpack.c.l.b16 %v1143
        %v1179 = vunpack.c.l.b16 %v1144
        %v1180 = vunpack.c.l.b16 %v1145
        %v1181 = vunpack.c.l.b16 %v1146
        %v1182 = vunpack.c.l.b16 %v1147
        %v1183 = vunpack.c.l.b16 %v1148
        %v1184 = vunpack.c.l.b16 %v1149
        %v1185 = vunpack.c.l.b16 %v1150
        %v1186 = vunpack.c.l.b16 %v1151
        %v1187 = vunpack.c.l.b16 %v1152
        %v1188 = vpack.c.b16 %v1173, %v1172
        %v1189 = vpack.c.b16 %v1175, %v1174
        %v1190 = vpack.c.b16 %v1177, %v1176
        %v1191 = vpack.c.b16 %v1179, %v1178
        %v1192 = vpack.c.b16 %v1181, %v1180
        %v1193 = vpack.c.b16 %v1183, %v1182
        %v1194 = vpack.c.b16 %v1185, %v1184
        %v1195 = vpack.c.b16 %v1187, %v1186
        %1204 = vmatpush.bf16.msra.mxu0 %v1195
        %1205 = vmatpush.bf16.msra.mxu0 %v1194
        %1206 = vmatpush.bf16.msra.mxu0 %v1193
        %1207 = vmatpush.bf16.msra.mxu0 %v1192
        %1208 = vmatpush.bf16.msra.mxu0 %v1191
        %1209 = vmatpush.bf16.msra.mxu0 %v1190
        %1210 = vmatpush.bf16.msra.mxu0 %v1189
        %1211 = vmatpush.bf16.msra.mxu0 %v1188
        %1212 = vmatmul.bf16.gmra.mxu0 %v1136
        %v1213 = vpop.f32.mrf.mxu0
        %v1214 = vadd.f32 %v1154, %v1213
        %v1215 = vpop.f32.mrf.mxu0
        %1216 = vdwg.mxu0
        %v1217 = vadd.f32 %v1214, %v575
        %1218 = vadd.xlane.f32.xlu0 %v1217
        %v1219 = vpop.xlane.xlu0 %1218
        %v1220 = vrcp.pop 128.0
        %v1221 = vmul.f32 128.0, %v1220
        %v1222 = vsub.f32 1.0, %v1221
        %v1223 = vmul.f32 %v1220, %v1222
        %v1224 = vadd.f32 %v1220, %v1223
        %vm1225 = vweird.f32 %v1220
        %v1226 = vsel %vm1225, %v1220, %v1224
        %v1227 = vmul.f32 %v1219, %v1226
        %v1228 = vsub.f32 %v1217, %v1227
        %v1229 = vmul.f32 %v1228, %v1228
        %1230 = vadd.xlane.f32.xlu0 %v1229
        %v1231 = vpop.xlane.xlu0 %1230
        %v1232 = vmul.f32 %v1231, %v1226
        %v1233 = vadd.f32 %v1232, 1e-05
        %v1234 = vrsqrt.pop %v1233
        %v1235 = vmul.f32 %v1234, %v1233
        %v1236 = vmul.f32 %v1235, %v1234
        %v1237 = vmul.f32 0.5, %v1236
        %v1238 = vsub.f32 1.5, %v1237
        %v1239 = vmul.f32 %v1234, %v1238
        %vm1240 = vweird.f32 %v1233
        %vm1241 = vweird.f32 %v1234
        %vm1242 = vmor %vm1240, %vm1241
        %v1243 = vsel %vm1242, %v1234, %v1239
        %v1244 = vmul.f32 %v1228, %v1243
        %v1246 = vperm.slane %v581, 0
        %v1248 = vmul.f32 %v1244, %v1246
        %v1250 = vperm.slane %v582, 0
        %v1252 = vadd.f32 %v1248, %v1250
        %1253 = vst [vmem:[%s566] sm:$0xff] %v1252
        %s1254 = sand.u32 %s309, 1
        %s1255 = scalar_lea.sflag [#allocation4], %s1254
        %s1256 = sand.u32 %s309, 1
        %s1257 = smul.addr %s1256, 8
        %s1258 = scalar_lea.vmem [#allocation13], %s1257
        %s1259 = sand.u32 %s335, 1
        %s1260 = scalar_lea.sflag [#allocation15], %s1259
        %s1261 = sand.u32 %s335, 1
        %s1262 = smul.addr %s1261, 32
        %s1263 = scalar_lea.vmem [#allocation14], %s1262
        // Predicated region
        $region93: #{tpu_custom_call.1} parent=67 // pred_check
          %p1264 = pneg %p319
        $region94: #{tpu_custom_call.1} parent=67 // pred_check_branch
          %1266 = sbr.rel (%p1264) target = $region96
        $region95: #{tpu_custom_call.1} parent=67 // pred_region
          %1268 = vsyncadd %s1255, 0
          %s1269 = smul.addr %s39, 8
          %s1270 = scalar_lea.hbm %s12, %s1269
          %s1272 = sshll.u32 %s1258, 4
          %s1273 = int_to_ptr.vmem [resolvable:$true] %s1272
          %s1274 = sshll.u32 %s1270, 4
          %s1275 = int_to_ptr.hbm [resolvable:$true] %s1274
          %1277 = dma.vmem_to_hbm [thread:$0]  %s1273, 128, %s1275, %s1255
        $region96: #{tpu_custom_call.1} parent=67 // pred_fallthru
          _
        // Predicated region
        $region97: #{tpu_custom_call.1} parent=67 // pred_check
          %p1278 = pneg %p345
        $region98: #{tpu_custom_call.1} parent=67 // pred_check_branch
          %1280 = sbr.rel (%p1278) target = $region100
        $region99: #{tpu_custom_call.1} parent=67 // pred_region
          %1282 = vsyncadd %s1260, 0
          %s1283 = smul.addr %s39, 4
          %s1284 = smul.addr %s1283, 8
          %s1285 = scalar_lea.hbm %s13, %s1284
          %s1286 = sshll.u32 %s1263, 4
          %s1287 = int_to_ptr.vmem [resolvable:$true] %s1286
          %s1288 = sshll.u32 %s1285, 4
          %s1289 = int_to_ptr.hbm [resolvable:$true] %s1288
          %1294 = dma.vmem_to_hbm [thread:$0]  %s1287, 512, %s1289, %s1260, 128, 128, 8
        $region100: #{tpu_custom_call.1} parent=67 // pred_fallthru
          _
      $region68: #{tpu_custom_call.1} parent=5 // pred_fallthru
        _
      %p1295 = scmp.le.s32.totalorder 2, %s34
      // Predicated region
      $region101: #{tpu_custom_call.1} parent=5 // pred_check
        %p1296 = pneg %p1295
      $region102: #{tpu_custom_call.1} parent=5 // pred_check_branch
        %1298 = sbr.rel (%p1296) target = $region104
      $region103: #{tpu_custom_call.1} parent=5 // pred_region
        %s1299 = ssub.s32 %s34, 2
        // Predicated region
        $region105: #{tpu_custom_call.1} parent=103 // pred_check
          %p1300 = pneg %p325
        $region106: #{tpu_custom_call.1} parent=103 // pred_check_branch
          %1302 = sbr.rel (%p1300) target = $region108
        $region107: #{tpu_custom_call.1} parent=103 // pred_region
          %s1303 = sand.u32 %s310, 1
          %s1304 = scalar_lea.sflag [#allocation4], %s1303
          %s1305 = sand.u32 %s310, 1
          %s1306 = smul.addr %s1305, 8
          %s1307 = scalar_lea.vmem [#allocation13], %s1306
          %1309 = dma.done %s1304, 128
        $region108: #{tpu_custom_call.1} parent=103 // pred_fallthru
          _
        // Predicated region
        $region109: #{tpu_custom_call.1} parent=103 // pred_check
          %p1310 = pneg %p351
        $region110: #{tpu_custom_call.1} parent=103 // pred_check_branch
          %1312 = sbr.rel (%p1310) target = $region112
        $region111: #{tpu_custom_call.1} parent=103 // pred_region
          %s1313 = sand.u32 %s336, 1
          %s1314 = scalar_lea.sflag [#allocation15], %s1313
          %s1315 = sand.u32 %s336, 1
          %s1316 = smul.addr %s1315, 32
          %s1317 = scalar_lea.vmem [#allocation14], %s1316
          %1319 = dma.done %s1314, 512
        $region112: #{tpu_custom_call.1} parent=103 // pred_fallthru
          _
      $region104: #{tpu_custom_call.1} parent=5 // pred_fallthru
        _
    $region6: #{tpu_custom_call.1} parent=1 // loop_footer
      %s38 = sadd.s32 1, %s34
    $region7: #{tpu_custom_call.1} parent=1 // loop_footer_branch
      %33 = sbr.rel target = $region3
    $region8: #{tpu_custom_call.1} parent=1 // loop_exit
      _
    %1320 = vsyncpa [#allocation3], 1
    %s1321 = scalar_lea.sflag [#allocation3], 1
    %1322 = vsyncpa %s1321, 1
    %1323 = vsyncpa [#allocation6], 1
    %s1324 = scalar_lea.sflag [#allocation6], 1
    %1325 = vsyncpa %s1324, 1
    %1326 = vsyncpa [#allocation9], 1
    %1327 = vsyncpa [#allocation12], 1
    %1328 = vsyncpa [#allocation4], 1
    %s1329 = scalar_lea.sflag [#allocation4], 1
    %1330 = vsyncpa %s1329, 1
    %1331 = vsyncpa [#allocation15], 1
    %s1332 = scalar_lea.sflag [#allocation15], 1
    %1333 = vsyncpa %s1332, 1

</llo_original>
